<compile_context>
chip_gen: v5e
topology: v5e:2x2
jax: 0.10.0
libtpu: 0.0.40
codegen_flags: <defaults>
</compile_context>

<pallas_src>
import functools
import math

import jax
import jax.numpy as jnp
from jax.experimental import pallas as pl
from jax.experimental.pallas import tpu as pltpu


CFG = dict(vocab_size=100, hidden=32, num_layers=2, num_heads=2,
           intermediate=64, max_pos=16, type_vocab=2, n_classes=2)


# ---------------------------- Pallas kernels ----------------------------

def _layernorm(x, g, b, eps):
    mean = jnp.mean(x, axis=-1, keepdims=True)
    d = x - mean
    var = jnp.mean(d * d, axis=-1, keepdims=True)
    return d * jax.lax.rsqrt(var + eps) * g + b


def _mm(a, w, bias):
    # bf16 MXU inputs, f32 accumulation.
    return jnp.dot(a.astype(jnp.bfloat16), w.astype(jnp.bfloat16),
                   preferred_element_type=jnp.float32) + bias


def _encoder_kernel(emb_ref, mask_ref, emb_g_ref, emb_b_ref,
                    wqkv_ref, bqkv_ref, wo_ref, bo_ref,
                    ln1_g_ref, ln1_b_ref,
                    wi_ref, bi_ref, wf_ref, bf_ref,
                    ln2_g_ref, ln2_b_ref,
                    x_out_ref,
                    x_sc,
                    *, B, S, nh, hd, eps, scale):
    layer = pl.program_id(0)
    H = nh * hd

    # Grid step 0: embedding LayerNorm initializes the resident activations.
    @pl.when(layer == 0)
    def _():
        x_sc[...] = _layernorm(emb_ref[...], emb_g_ref[...], emb_b_ref[...], eps)

    x = x_sc[...]                                            # (B*S, H) f32

    # ---- fused QKV projection ----
    qkv = _mm(x, wqkv_ref[0], bqkv_ref[0])                   # (B*S, 3H)

    # ---- multi-head self attention (all heads in this kernel) ----
    # Additive bias built in-kernel from the raw (B, S) mask (HF: (1-m)*-1e4).
    bias = ((1.0 - mask_ref[...]) * -10000.0)[:, None, :]    # (B, 1, S)

    ctx_parts = []
    for h in range(nh):                                      # static unroll
        qh = qkv[:, h * hd:(h + 1) * hd].reshape(B, S, hd)
        kh = qkv[:, H + h * hd:H + (h + 1) * hd].reshape(B, S, hd)
        vh = qkv[:, 2 * H + h * hd:2 * H + (h + 1) * hd].reshape(B, S, hd)
        s = jnp.einsum('bqd,bkd->bqk',
                       qh.astype(jnp.bfloat16), kh.astype(jnp.bfloat16),
                       preferred_element_type=jnp.float32)
        s = s * scale + bias
        s = s - jnp.max(s, axis=-1, keepdims=True)
        p = jnp.exp(s)
        p = p * pl.reciprocal(jnp.sum(p, axis=-1, keepdims=True), approx=True)
        ctx_parts.append(
            jnp.einsum('bqk,bkd->bqd',
                       p.astype(jnp.bfloat16), vh.astype(jnp.bfloat16),
                       preferred_element_type=jnp.float32))  # (B, S, hd)
    ctx = jnp.concatenate(ctx_parts, axis=-1).reshape(B * S, H)

    # ---- attention output projection + residual + LayerNorm ----
    attn_out = _mm(ctx, wo_ref[0], bo_ref[0])
    x1 = _layernorm(attn_out + x, ln1_g_ref[0], ln1_b_ref[0], eps)

    # ---- FFN ----
    inter = _mm(x1, wi_ref[0], bi_ref[0])
    # TODO(synk): HF BERT uses exact erf-GELU; tanh approximation used since
    # erf has no guaranteed Mosaic lowering.
    c = 0.7978845608028654  # sqrt(2/pi)
    inter = 0.5 * inter * (1.0 + jnp.tanh(c * (inter + 0.044715 * inter * inter * inter)))
    ffn = _mm(inter, wf_ref[0], bf_ref[0])
    x2 = _layernorm(ffn + x1, ln2_g_ref[0], ln2_b_ref[0], eps)

    # TODO(synk): nn.Dropout is identity at inference; not reproduced.
    x_sc[...] = x2
    x_out_ref[...] = x2


def _head_kernel(cls_ref, pw_ref, pb_ref, cw_ref, cb_ref, o_ref):
    # BERT pooler (dense + tanh on CLS) fused with the classifier head.
    pooled = jnp.tanh(_mm(cls_ref[...], pw_ref[...], pb_ref[...]))
    o_ref[...] = _mm(pooled, cw_ref[...], cb_ref[...])


# ---------------------------- Model (glue) ----------------------------

def init_params(key, cfg):
    H = cfg["hidden"]
    I = cfg["intermediate"]
    L = cfg["num_layers"]

    def nrm(k, shape):
        return 0.02 * jax.random.normal(k, shape, jnp.float32)

    keys = iter(jax.random.split(key, 128))
    p = {
        "word_emb": nrm(next(keys), (cfg["vocab_size"], H)),
        "pos_emb": nrm(next(keys), (cfg["max_pos"], H)),
        "type_emb": nrm(next(keys), (cfg["type_vocab"], H)),
        "emb_ln_g": jnp.ones((H,), jnp.float32),
        "emb_ln_b": jnp.zeros((H,), jnp.float32),
        "pool_w": nrm(next(keys), (H, H)),
        "pool_b": jnp.zeros((H,), jnp.float32),
        "cls_w": nrm(next(keys), (H, cfg["n_classes"])),
        "cls_b": jnp.zeros((cfg["n_classes"],), jnp.float32),
    }

    wqkv, bqkv, wo, bo = [], [], [], []
    ln1_g, ln1_b, wi, bi, wf, bf, ln2_g, ln2_b = [], [], [], [], [], [], [], []
    for _ in range(L):
        wq, wk, wv = nrm(next(keys), (H, H)), nrm(next(keys), (H, H)), nrm(next(keys), (H, H))
        wqkv.append(jnp.concatenate([wq, wk, wv], axis=1))           # (H, 3H)
        bqkv.append(jnp.zeros((1, 3 * H), jnp.float32))
        wo.append(nrm(next(keys), (H, H)))
        bo.append(jnp.zeros((1, H), jnp.float32))
        ln1_g.append(jnp.ones((1, H), jnp.float32))
        ln1_b.append(jnp.zeros((1, H), jnp.float32))
        wi.append(nrm(next(keys), (H, I)))
        bi.append(jnp.zeros((1, I), jnp.float32))
        wf.append(nrm(next(keys), (I, H)))
        bf.append(jnp.zeros((1, H), jnp.float32))
        ln2_g.append(jnp.ones((1, H), jnp.float32))
        ln2_b.append(jnp.zeros((1, H), jnp.float32))

    p["layers"] = {
        "wqkv": jnp.stack(wqkv), "bqkv": jnp.stack(bqkv),
        "wo": jnp.stack(wo), "bo": jnp.stack(bo),
        "ln1_g": jnp.stack(ln1_g), "ln1_b": jnp.stack(ln1_b),
        "wi": jnp.stack(wi), "bi": jnp.stack(bi),
        "wf": jnp.stack(wf), "bf": jnp.stack(bf),
        "ln2_g": jnp.stack(ln2_g), "ln2_b": jnp.stack(ln2_b),
    }
    return p


def ts_classifier_forward(params, input_ids, attention_mask, token_type_ids, cfg):
    B, S = input_ids.shape
    H = cfg["hidden"]
    nh = cfg["num_heads"]
    hd = H // nh
    L = cfg["num_layers"]
    I = cfg["intermediate"]
    C = cfg["n_classes"]

    # Embedding lookups (tiny gathers) in plain XLA, summed; LayerNorm happens
    # inside the fused encoder kernel at grid step 0.
    emb = (params["word_emb"][input_ids]
           + params["pos_emb"][jnp.arange(S)][None, :, :]
           + params["type_emb"][token_type_ids]).reshape(B * S, H)
    mask_f = attention_mask.astype(jnp.float32)

    lp = params["layers"]
    kernel = functools.partial(_encoder_kernel, B=B, S=S, nh=nh, hd=hd,
                               eps=1e-12, scale=1.0 / math.sqrt(hd))

    const2 = lambda l: (0, 0)
    stack3 = lambda l: (l, 0, 0)

    x = pl.pallas_call(
        kernel,
        out_shape=jax.ShapeDtypeStruct((B * S, H), jnp.float32),
        grid=(L,),
        in_specs=[
            pl.BlockSpec((B * S, H), const2),        # emb
            pl.BlockSpec((B, S), const2),            # attention mask (raw)
            pl.BlockSpec((1, H), const2),            # emb_ln_g
            pl.BlockSpec((1, H), const2),            # emb_ln_b
            pl.BlockSpec((1, H, 3 * H), stack3),     # wqkv
            pl.BlockSpec((1, 1, 3 * H), stack3),     # bqkv
            pl.BlockSpec((1, H, H), stack3),         # wo
            pl.BlockSpec((1, 1, H), stack3),         # bo
            pl.BlockSpec((1, 1, H), stack3),         # ln1_g
            pl.BlockSpec((1, 1, H), stack3),         # ln1_b
            pl.BlockSpec((1, H, I), stack3),         # wi
            pl.BlockSpec((1, 1, I), stack3),         # bi
            pl.BlockSpec((1, I, H), stack3),         # wf
            pl.BlockSpec((1, 1, H), stack3),         # bf
            pl.BlockSpec((1, 1, H), stack3),         # ln2_g
            pl.BlockSpec((1, 1, H), stack3),         # ln2_b
        ],
        out_specs=pl.BlockSpec((B * S, H), const2),
        scratch_shapes=[pltpu.VMEM((B * S, H), jnp.float32)],
        compiler_params=pltpu.CompilerParams(
            dimension_semantics=("arbitrary",)),
    )(emb, mask_f,
      params["emb_ln_g"].reshape(1, H), params["emb_ln_b"].reshape(1, H),
      lp["wqkv"], lp["bqkv"], lp["wo"], lp["bo"],
      lp["ln1_g"], lp["ln1_b"], lp["wi"], lp["bi"],
      lp["wf"], lp["bf"], lp["ln2_g"], lp["ln2_b"])

    cls = x.reshape(B, S, H)[:, 0, :]                # (B, H) [CLS] tokens

    logits = pl.pallas_call(
        _head_kernel,
        out_shape=jax.ShapeDtypeStruct((B, C), jnp.float32),
        grid=(1,),
        in_specs=[
            pl.BlockSpec((B, H), lambda i: (0, 0)),
            pl.BlockSpec((H, H), lambda i: (0, 0)),
            pl.BlockSpec((1, H), lambda i: (0, 0)),
            pl.BlockSpec((H, C), lambda i: (0, 0)),
            pl.BlockSpec((1, C), lambda i: (0, 0)),
        ],
        out_specs=pl.BlockSpec((B, C), lambda i: (0, 0)),
    )(cls, params["pool_w"], params["pool_b"].reshape(1, H),
      params["cls_w"], params["cls_b"].reshape(1, C))
    return logits


if __name__ == "__main__":
    cfg = CFG
    key = jax.random.PRNGKey(0)
    pkey, dkey = jax.random.split(key)
    params = init_params(pkey, cfg)

    B, S = 2, 8
    input_ids = jax.random.randint(dkey, (B, S), 0, cfg["vocab_size"],
                                   dtype=jnp.int32)
    attention_mask = jnp.ones((B, S), jnp.int32).at[1, 6:].set(0)
    token_type_ids = jnp.zeros((B, S), jnp.int32).at[:, 4:].set(1)

    logits = ts_classifier_forward(params, input_ids, attention_mask,
                                   token_type_ids, cfg)
    jax.block_until_ready(logits)
    assert logits.shape == (B, cfg["n_classes"])
    assert logits.dtype == jnp.float32
    print("KERNEL_OK")
</pallas_src>

<mosaic_0001>
module attributes {stable_mosaic.version = 11 : i64} {
  func.func @_encoder_kernel(%arg0: i32, %arg1: memref<16x32xf32, #tpu.memory_space<vmem>>, %arg2: memref<2x8xf32, #tpu.memory_space<vmem>>, %arg3: memref<1x32xf32, #tpu.memory_space<vmem>>, %arg4: memref<1x32xf32, #tpu.memory_space<vmem>>, %arg5: memref<1x32x96xf32, #tpu.memory_space<vmem>>, %arg6: memref<1x1x96xf32, #tpu.memory_space<vmem>>, %arg7: memref<1x32x32xf32, #tpu.memory_space<vmem>>, %arg8: memref<1x1x32xf32, #tpu.memory_space<vmem>>, %arg9: memref<1x1x32xf32, #tpu.memory_space<vmem>>, %arg10: memref<1x1x32xf32, #tpu.memory_space<vmem>>, %arg11: memref<1x32x64xf32, #tpu.memory_space<vmem>>, %arg12: memref<1x1x64xf32, #tpu.memory_space<vmem>>, %arg13: memref<1x64x32xf32, #tpu.memory_space<vmem>>, %arg14: memref<1x1x32xf32, #tpu.memory_space<vmem>>, %arg15: memref<1x1x32xf32, #tpu.memory_space<vmem>>, %arg16: memref<1x1x32xf32, #tpu.memory_space<vmem>>, %arg17: memref<16x32xf32, #tpu.memory_space<vmem>>, %arg18: memref<16x32xf32, #tpu.memory_space<vmem>>) attributes {dimension_semantics = [#tpu.dimension_semantics<arbitrary>], iteration_bounds = array<i64: 2>, scalar_prefetch = 0 : i64, scratch_operands = 1 : i64, tpu.core_type = #tpu.core_type<tc>, window_params = [{pipeline_mode = #tpu.pipeline_mode<synchronous>, transform_indices = @transform_0, window_bounds = array<i64: 16, 32>}, {pipeline_mode = #tpu.pipeline_mode<synchronous>, transform_indices = @transform_1, window_bounds = array<i64: 2, 8>}, {pipeline_mode = #tpu.pipeline_mode<synchronous>, transform_indices = @transform_2, window_bounds = array<i64: 1, 32>}, {pipeline_mode = #tpu.pipeline_mode<synchronous>, transform_indices = @transform_3, window_bounds = array<i64: 1, 32>}, {transform_indices = @transform_4, window_bounds = array<i64: 1, 32, 96>}, {transform_indices = @transform_5, window_bounds = array<i64: 1, 1, 96>}, {transform_indices = @transform_6, window_bounds = array<i64: 1, 32, 32>}, {transform_indices = @transform_7, window_bounds = array<i64: 1, 1, 32>}, {transform_indices = @transform_8, window_bounds = array<i64: 1, 1, 32>}, {transform_indices = @transform_9, window_bounds = array<i64: 1, 1, 32>}, {transform_indices = @transform_10, window_bounds = array<i64: 1, 32, 64>}, {transform_indices = @transform_11, window_bounds = array<i64: 1, 1, 64>}, {transform_indices = @transform_12, window_bounds = array<i64: 1, 64, 32>}, {transform_indices = @transform_13, window_bounds = array<i64: 1, 1, 32>}, {transform_indices = @transform_14, window_bounds = array<i64: 1, 1, 32>}, {transform_indices = @transform_15, window_bounds = array<i64: 1, 1, 32>}, {pipeline_mode = #tpu.pipeline_mode<synchronous>, transform_indices = @transform_16, window_bounds = array<i64: 16, 32>}]} {
    %c0_i32 = arith.constant 0 : i32
    %0 = arith.cmpi eq, %arg0, %c0_i32 : i32
    %1 = arith.extui %0 : i1 to i32
    %c0_i32_0 = arith.constant 0 : i32
    %2 = arith.cmpi ne, %1, %c0_i32_0 : i32
    scf.if %2 {
      %c0_73 = arith.constant 0 : index
      %c0_74 = arith.constant 0 : index
      %165 = vector.load %arg1[%c0_73, %c0_74] : memref<16x32xf32, #tpu.memory_space<vmem>>, vector<16x32xf32>
      %c0_75 = arith.constant 0 : index
      %c0_76 = arith.constant 0 : index
      %166 = vector.load %arg3[%c0_75, %c0_76] : memref<1x32xf32, #tpu.memory_space<vmem>>, vector<1x32xf32>
      %c0_77 = arith.constant 0 : index
      %c0_78 = arith.constant 0 : index
      %167 = vector.load %arg4[%c0_77, %c0_78] : memref<1x32xf32, #tpu.memory_space<vmem>>, vector<1x32xf32>
      %cst_79 = arith.constant dense<0.000000e+00> : vector<16xf32>
      %168 = vector.multi_reduction <add>, %165, %cst_79 [1] : vector<16x32xf32> to vector<16xf32>
      %169 = vector.shape_cast %168 : vector<16xf32> to vector<16x1xf32>
      %cst_80 = arith.constant 3.200000e+01 : f32
      %170 = vector.broadcast %cst_80 : f32 to vector<16x1xf32>
      %171 = arith.divf %169, %170 : vector<16x1xf32>
      %172 = vector.broadcast %171 : vector<16x1xf32> to vector<16x32xf32>
      %173 = arith.subf %165, %172 : vector<16x32xf32>
      %174 = arith.mulf %173, %173 : vector<16x32xf32>
      %cst_81 = arith.constant dense<0.000000e+00> : vector<16xf32>
      %175 = vector.multi_reduction <add>, %174, %cst_81 [1] : vector<16x32xf32> to vector<16xf32>
      %176 = vector.shape_cast %175 : vector<16xf32> to vector<16x1xf32>
      %cst_82 = arith.constant 3.200000e+01 : f32
      %177 = vector.broadcast %cst_82 : f32 to vector<16x1xf32>
      %178 = arith.divf %176, %177 : vector<16x1xf32>
      %cst_83 = arith.constant 9.99999996E-13 : f32
      %179 = vector.broadcast %cst_83 : f32 to vector<16x1xf32>
      %180 = arith.addf %178, %179 : vector<16x1xf32>
      %181 = math.rsqrt %180 : vector<16x1xf32>
      %182 = vector.broadcast %181 : vector<16x1xf32> to vector<16x32xf32>
      %183 = arith.mulf %173, %182 : vector<16x32xf32>
      %184 = vector.broadcast %166 : vector<1x32xf32> to vector<16x32xf32>
      %185 = arith.mulf %183, %184 : vector<16x32xf32>
      %186 = vector.broadcast %167 : vector<1x32xf32> to vector<16x32xf32>
      %187 = arith.addf %185, %186 : vector<16x32xf32>
      %c0_84 = arith.constant 0 : index
      %c0_85 = arith.constant 0 : index
      %188 = vector.load %arg18[%c0_84, %c0_85] : memref<16x32xf32, #tpu.memory_space<vmem>>, vector<16x32xf32>
      tpu.vector_store %arg18[%c0_84, %c0_85], %187 {strides = array<i32>} : memref<16x32xf32, #tpu.memory_space<vmem>>, vector<16x32xf32>,
    } else {
    }
    %c0 = arith.constant 0 : index
    %c0_1 = arith.constant 0 : index
    %3 = vector.load %arg18[%c0, %c0_1] : memref<16x32xf32, #tpu.memory_space<vmem>>, vector<16x32xf32>
    %c0_2 = arith.constant 0 : index
    %c0_3 = arith.constant 0 : index
    %c0_4 = arith.constant 0 : index
    %4 = vector.load %arg5[%c0_2, %c0_3, %c0_4] : memref<1x32x96xf32, #tpu.memory_space<vmem>>, vector<1x32x96xf32>
    %5 = vector.shape_cast %4 : vector<1x32x96xf32> to vector<32x96xf32>
    %c0_5 = arith.constant 0 : index
    %c0_6 = arith.constant 0 : index
    %c0_7 = arith.constant 0 : index
    %6 = vector.load %arg6[%c0_5, %c0_6, %c0_7] : memref<1x1x96xf32, #tpu.memory_space<vmem>>, vector<1x1x96xf32>
    %7 = vector.shape_cast %6 : vector<1x1x96xf32> to vector<1x96xf32>
    %8 = arith.truncf %3 : vector<16x32xf32> to vector<16x32xbf16>
    %9 = arith.truncf %5 : vector<32x96xf32> to vector<32x96xbf16>
    %cst = arith.constant dense<0.000000e+00> : vector<16x96xf32>
    %10 = tpu.matmul %8, %9, %cst {dimension_numbers = #tpu.dot_dimension_numbers<[1], [0], [0], [1], [0, 0, 1, 1], [], []>} : vector<16x32xbf16>, vector<32x96xbf16>, vector<16x96xf32> -> vector<16x96xf32>
    %11 = vector.broadcast %7 : vector<1x96xf32> to vector<16x96xf32>
    %12 = arith.addf %10, %11 : vector<16x96xf32>
    %c0_8 = arith.constant 0 : index
    %c0_9 = arith.constant 0 : index
    %13 = vector.load %arg2[%c0_8, %c0_9] : memref<2x8xf32, #tpu.memory_space<vmem>>, vector<2x8xf32>
    %cst_10 = arith.constant 1.000000e+00 : f32
    %14 = vector.broadcast %cst_10 : f32 to vector<2x8xf32>
    %15 = arith.subf %14, %13 : vector<2x8xf32>
    %cst_11 = arith.constant -1.000000e+04 : f32
    %16 = vector.broadcast %cst_11 : f32 to vector<2x8xf32>
    %17 = arith.mulf %15, %16 : vector<2x8xf32>
    %18 = vector.shape_cast %17 : vector<2x8xf32> to vector<2x1x8xf32>
    %19 = vector.extract_strided_slice %12 {offsets = [0, 0], sizes = [16, 16], strides = [1, 1]} : vector<16x96xf32> to vector<16x16xf32>
    %20 = vector.shape_cast %19 : vector<16x16xf32> to vector<2x8x16xf32>
    %21 = vector.extract_strided_slice %12 {offsets = [0, 32], sizes = [16, 16], strides = [1, 1]} : vector<16x96xf32> to vector<16x16xf32>
    %22 = vector.shape_cast %21 : vector<16x16xf32> to vector<2x8x16xf32>
    %23 = vector.extract_strided_slice %12 {offsets = [0, 64], sizes = [16, 16], strides = [1, 1]} : vector<16x96xf32> to vector<16x16xf32>
    %24 = vector.shape_cast %23 : vector<16x16xf32> to vector<2x8x16xf32>
    %25 = arith.truncf %20 : vector<2x8x16xf32> to vector<2x8x16xbf16>
    %26 = arith.truncf %22 : vector<2x8x16xf32> to vector<2x8x16xbf16>
    "tpu.trace_start"() <{level = 10 : i32, message = "bqd,bkd->bqk"}> : () -> ()
    %cst_12 = arith.constant dense<0.000000e+00> : vector<2x8x8xf32>
    %27 = tpu.matmul %25, %26, %cst_12 {dimension_numbers = #tpu.dot_dimension_numbers<[2], [2], [1], [1], [0, 0, 0, 1, 1, 1], [0], [0]>} : vector<2x8x16xbf16>, vector<2x8x16xbf16>, vector<2x8x8xf32> -> vector<2x8x8xf32>
    "tpu.trace_stop"() : () -> ()
    %cst_13 = arith.constant 2.500000e-01 : f32
    %28 = vector.broadcast %cst_13 : f32 to vector<2x8x8xf32>
    %29 = arith.mulf %27, %28 : vector<2x8x8xf32>
    %30 = vector.broadcast %18 : vector<2x1x8xf32> to vector<2x8x8xf32>
    %31 = arith.addf %29, %30 : vector<2x8x8xf32>
    %cst_14 = arith.constant dense<0xFF800000> : vector<2x8xf32>
    %32 = vector.multi_reduction <maximumf>, %31, %cst_14 [2] : vector<2x8x8xf32> to vector<2x8xf32>
    %33 = vector.shape_cast %32 : vector<2x8xf32> to vector<2x8x1xf32>
    %34 = vector.broadcast %33 : vector<2x8x1xf32> to vector<2x8x8xf32>
    %35 = arith.subf %31, %34 : vector<2x8x8xf32>
    %36 = math.exp %35 : vector<2x8x8xf32>
    %cst_15 = arith.constant dense<0.000000e+00> : vector<2x8xf32>
    %37 = vector.multi_reduction <add>, %36, %cst_15 [2] : vector<2x8x8xf32> to vector<2x8xf32>
    %38 = vector.shape_cast %37 : vector<2x8xf32> to vector<2x8x1xf32>
    %39 = tpu.reciprocal %38 {approx = true} : vector<2x8x1xf32> -> vector<2x8x1xf32>
    %40 = vector.broadcast %39 : vector<2x8x1xf32> to vector<2x8x8xf32>
    %41 = arith.mulf %36, %40 : vector<2x8x8xf32>
    %42 = arith.truncf %41 : vector<2x8x8xf32> to vector<2x8x8xbf16>
    %43 = arith.truncf %24 : vector<2x8x16xf32> to vector<2x8x16xbf16>
    "tpu.trace_start"() <{level = 10 : i32, message = "bqk,bkd->bqd"}> : () -> ()
    %cst_16 = arith.constant dense<0.000000e+00> : vector<2x8x16xf32>
    %44 = tpu.matmul %42, %43, %cst_16 {dimension_numbers = #tpu.dot_dimension_numbers<[2], [1], [1], [2], [0, 0, 0, 1, 1, 2], [0], [0]>} : vector<2x8x8xbf16>, vector<2x8x16xbf16>, vector<2x8x16xf32> -> vector<2x8x16xf32>
    "tpu.trace_stop"() : () -> ()
    %45 = vector.extract_strided_slice %12 {offsets = [0, 16], sizes = [16, 16], strides = [1, 1]} : vector<16x96xf32> to vector<16x16xf32>
    %46 = vector.shape_cast %45 : vector<16x16xf32> to vector<2x8x16xf32>
    %47 = vector.extract_strided_slice %12 {offsets = [0, 48], sizes = [16, 16], strides = [1, 1]} : vector<16x96xf32> to vector<16x16xf32>
    %48 = vector.shape_cast %47 : vector<16x16xf32> to vector<2x8x16xf32>
    %49 = vector.extract_strided_slice %12 {offsets = [0, 80], sizes = [16, 16], strides = [1, 1]} : vector<16x96xf32> to vector<16x16xf32>
    %50 = vector.shape_cast %49 : vector<16x16xf32> to vector<2x8x16xf32>
    %51 = arith.truncf %46 : vector<2x8x16xf32> to vector<2x8x16xbf16>
    %52 = arith.truncf %48 : vector<2x8x16xf32> to vector<2x8x16xbf16>
    "tpu.trace_start"() <{level = 10 : i32, message = "bqd,bkd->bqk"}> : () -> ()
    %cst_17 = arith.constant dense<0.000000e+00> : vector<2x8x8xf32>
    %53 = tpu.matmul %51, %52, %cst_17 {dimension_numbers = #tpu.dot_dimension_numbers<[2], [2], [1], [1], [0, 0, 0, 1, 1, 1], [0], [0]>} : vector<2x8x16xbf16>, vector<2x8x16xbf16>, vector<2x8x8xf32> -> vector<2x8x8xf32>
    "tpu.trace_stop"() : () -> ()
    %cst_18 = arith.constant 2.500000e-01 : f32
    %54 = vector.broadcast %cst_18 : f32 to vector<2x8x8xf32>
    %55 = arith.mulf %53, %54 : vector<2x8x8xf32>
    %56 = vector.broadcast %18 : vector<2x1x8xf32> to vector<2x8x8xf32>
    %57 = arith.addf %55, %56 : vector<2x8x8xf32>
    %cst_19 = arith.constant dense<0xFF800000> : vector<2x8xf32>
    %58 = vector.multi_reduction <maximumf>, %57, %cst_19 [2] : vector<2x8x8xf32> to vector<2x8xf32>
    %59 = vector.shape_cast %58 : vector<2x8xf32> to vector<2x8x1xf32>
    %60 = vector.broadcast %59 : vector<2x8x1xf32> to vector<2x8x8xf32>
    %61 = arith.subf %57, %60 : vector<2x8x8xf32>
    %62 = math.exp %61 : vector<2x8x8xf32>
    %cst_20 = arith.constant dense<0.000000e+00> : vector<2x8xf32>
    %63 = vector.multi_reduction <add>, %62, %cst_20 [2] : vector<2x8x8xf32> to vector<2x8xf32>
    %64 = vector.shape_cast %63 : vector<2x8xf32> to vector<2x8x1xf32>
    %65 = tpu.reciprocal %64 {approx = true} : vector<2x8x1xf32> -> vector<2x8x1xf32>
    %66 = vector.broadcast %65 : vector<2x8x1xf32> to vector<2x8x8xf32>
    %67 = arith.mulf %62, %66 : vector<2x8x8xf32>
    %68 = arith.truncf %67 : vector<2x8x8xf32> to vector<2x8x8xbf16>
    %69 = arith.truncf %50 : vector<2x8x16xf32> to vector<2x8x16xbf16>
    "tpu.trace_start"() <{level = 10 : i32, message = "bqk,bkd->bqd"}> : () -> ()
    %cst_21 = arith.constant dense<0.000000e+00> : vector<2x8x16xf32>
    %70 = tpu.matmul %68, %69, %cst_21 {dimension_numbers = #tpu.dot_dimension_numbers<[2], [1], [1], [2], [0, 0, 0, 1, 1, 2], [0], [0]>} : vector<2x8x8xbf16>, vector<2x8x16xbf16>, vector<2x8x16xf32> -> vector<2x8x16xf32>
    "tpu.trace_stop"() : () -> ()
    %71 = tpu.concatenate %44, %70 in 2 : vector<2x8x16xf32>, vector<2x8x16xf32> -> vector<2x8x32xf32>
    %72 = vector.shape_cast %71 : vector<2x8x32xf32> to vector<16x32xf32>
    %c0_22 = arith.constant 0 : index
    %c0_23 = arith.constant 0 : index
    %c0_24 = arith.constant 0 : index
    %73 = vector.load %arg7[%c0_22, %c0_23, %c0_24] : memref<1x32x32xf32, #tpu.memory_space<vmem>>, vector<1x32x32xf32>
    %74 = vector.shape_cast %73 : vector<1x32x32xf32> to vector<32x32xf32>
    %c0_25 = arith.constant 0 : index
    %c0_26 = arith.constant 0 : index
    %c0_27 = arith.constant 0 : index
    %75 = vector.load %arg8[%c0_25, %c0_26, %c0_27] : memref<1x1x32xf32, #tpu.memory_space<vmem>>, vector<1x1x32xf32>
    %76 = vector.shape_cast %75 : vector<1x1x32xf32> to vector<1x32xf32>
    %77 = arith.truncf %72 : vector<16x32xf32> to vector<16x32xbf16>
    %78 = arith.truncf %74 : vector<32x32xf32> to vector<32x32xbf16>
    %cst_28 = arith.constant dense<0.000000e+00> : vector<16x32xf32>
    %79 = tpu.matmul %77, %78, %cst_28 {dimension_numbers = #tpu.dot_dimension_numbers<[1], [0], [0], [1], [0, 0, 1, 1], [], []>} : vector<16x32xbf16>, vector<32x32xbf16>, vector<16x32xf32> -> vector<16x32xf32>
    %80 = vector.broadcast %76 : vector<1x32xf32> to vector<16x32xf32>
    %81 = arith.addf %79, %80 : vector<16x32xf32>
    %82 = arith.addf %81, %3 : vector<16x32xf32>
    %c0_29 = arith.constant 0 : index
    %c0_30 = arith.constant 0 : index
    %c0_31 = arith.constant 0 : index
    %83 = vector.load %arg9[%c0_29, %c0_30, %c0_31] : memref<1x1x32xf32, #tpu.memory_space<vmem>>, vector<1x1x32xf32>
    %84 = vector.shape_cast %83 : vector<1x1x32xf32> to vector<1x32xf32>
    %c0_32 = arith.constant 0 : index
    %c0_33 = arith.constant 0 : index
    %c0_34 = arith.constant 0 : index
    %85 = vector.load %arg10[%c0_32, %c0_33, %c0_34] : memref<1x1x32xf32, #tpu.memory_space<vmem>>, vector<1x1x32xf32>
    %86 = vector.shape_cast %85 : vector<1x1x32xf32> to vector<1x32xf32>
    %cst_35 = arith.constant dense<0.000000e+00> : vector<16xf32>
    %87 = vector.multi_reduction <add>, %82, %cst_35 [1] : vector<16x32xf32> to vector<16xf32>
    %88 = vector.shape_cast %87 : vector<16xf32> to vector<16x1xf32>
    %cst_36 = arith.constant 3.200000e+01 : f32
    %89 = vector.broadcast %cst_36 : f32 to vector<16x1xf32>
    %90 = arith.divf %88, %89 : vector<16x1xf32>
    %91 = vector.broadcast %90 : vector<16x1xf32> to vector<16x32xf32>
    %92 = arith.subf %82, %91 : vector<16x32xf32>
    %93 = arith.mulf %92, %92 : vector<16x32xf32>
    %cst_37 = arith.constant dense<0.000000e+00> : vector<16xf32>
    %94 = vector.multi_reduction <add>, %93, %cst_37 [1] : vector<16x32xf32> to vector<16xf32>
    %95 = vector.shape_cast %94 : vector<16xf32> to vector<16x1xf32>
    %cst_38 = arith.constant 3.200000e+01 : f32
    %96 = vector.broadcast %cst_38 : f32 to vector<16x1xf32>
    %97 = arith.divf %95, %96 : vector<16x1xf32>
    %cst_39 = arith.constant 9.99999996E-13 : f32
    %98 = vector.broadcast %cst_39 : f32 to vector<16x1xf32>
    %99 = arith.addf %97, %98 : vector<16x1xf32>
    %100 = math.rsqrt %99 : vector<16x1xf32>
    %101 = vector.broadcast %100 : vector<16x1xf32> to vector<16x32xf32>
    %102 = arith.mulf %92, %101 : vector<16x32xf32>
    %103 = vector.broadcast %84 : vector<1x32xf32> to vector<16x32xf32>
    %104 = arith.mulf %102, %103 : vector<16x32xf32>
    %105 = vector.broadcast %86 : vector<1x32xf32> to vector<16x32xf32>
    %106 = arith.addf %104, %105 : vector<16x32xf32>
    %c0_40 = arith.constant 0 : index
    %c0_41 = arith.constant 0 : index
    %c0_42 = arith.constant 0 : index
    %107 = vector.load %arg11[%c0_40, %c0_41, %c0_42] : memref<1x32x64xf32, #tpu.memory_space<vmem>>, vector<1x32x64xf32>
    %108 = vector.shape_cast %107 : vector<1x32x64xf32> to vector<32x64xf32>
    %c0_43 = arith.constant 0 : index
    %c0_44 = arith.constant 0 : index
    %c0_45 = arith.constant 0 : index
    %109 = vector.load %arg12[%c0_43, %c0_44, %c0_45] : memref<1x1x64xf32, #tpu.memory_space<vmem>>, vector<1x1x64xf32>
    %110 = vector.shape_cast %109 : vector<1x1x64xf32> to vector<1x64xf32>
    %111 = arith.truncf %106 : vector<16x32xf32> to vector<16x32xbf16>
    %112 = arith.truncf %108 : vector<32x64xf32> to vector<32x64xbf16>
    %cst_46 = arith.constant dense<0.000000e+00> : vector<16x64xf32>
    %113 = tpu.matmul %111, %112, %cst_46 {dimension_numbers = #tpu.dot_dimension_numbers<[1], [0], [0], [1], [0, 0, 1, 1], [], []>} : vector<16x32xbf16>, vector<32x64xbf16>, vector<16x64xf32> -> vector<16x64xf32>
    %114 = vector.broadcast %110 : vector<1x64xf32> to vector<16x64xf32>
    %115 = arith.addf %113, %114 : vector<16x64xf32>
    %cst_47 = arith.constant 5.000000e-01 : f32
    %116 = vector.broadcast %cst_47 : f32 to vector<16x64xf32>
    %117 = arith.mulf %116, %115 : vector<16x64xf32>
    %cst_48 = arith.constant 4.471500e-02 : f32
    %118 = vector.broadcast %cst_48 : f32 to vector<16x64xf32>
    %119 = arith.mulf %118, %115 : vector<16x64xf32>
    %120 = arith.mulf %119, %115 : vector<16x64xf32>
    %121 = arith.mulf %120, %115 : vector<16x64xf32>
    %122 = arith.addf %115, %121 : vector<16x64xf32>
    %cst_49 = arith.constant 0.797884583 : f32
    %123 = vector.broadcast %cst_49 : f32 to vector<16x64xf32>
    %124 = arith.mulf %123, %122 : vector<16x64xf32>
    %125 = math.tanh %124 : vector<16x64xf32>
    %cst_50 = arith.constant 1.000000e+00 : f32
    %126 = vector.broadcast %cst_50 : f32 to vector<16x64xf32>
    %127 = arith.addf %126, %125 : vector<16x64xf32>
    %128 = arith.mulf %117, %127 : vector<16x64xf32>
    %c0_51 = arith.constant 0 : index
    %c0_52 = arith.constant 0 : index
    %c0_53 = arith.constant 0 : index
    %129 = vector.load %arg13[%c0_51, %c0_52, %c0_53] : memref<1x64x32xf32, #tpu.memory_space<vmem>>, vector<1x64x32xf32>
    %130 = vector.shape_cast %129 : vector<1x64x32xf32> to vector<64x32xf32>
    %c0_54 = arith.constant 0 : index
    %c0_55 = arith.constant 0 : index
    %c0_56 = arith.constant 0 : index
    %131 = vector.load %arg14[%c0_54, %c0_55, %c0_56] : memref<1x1x32xf32, #tpu.memory_space<vmem>>, vector<1x1x32xf32>
    %132 = vector.shape_cast %131 : vector<1x1x32xf32> to vector<1x32xf32>
    %133 = arith.truncf %128 : vector<16x64xf32> to vector<16x64xbf16>
    %134 = arith.truncf %130 : vector<64x32xf32> to vector<64x32xbf16>
    %cst_57 = arith.constant dense<0.000000e+00> : vector<16x32xf32>
    %135 = tpu.matmul %133, %134, %cst_57 {dimension_numbers = #tpu.dot_dimension_numbers<[1], [0], [0], [1], [0, 0, 1, 1], [], []>} : vector<16x64xbf16>, vector<64x32xbf16>, vector<16x32xf32> -> vector<16x32xf32>
    %136 = vector.broadcast %132 : vector<1x32xf32> to vector<16x32xf32>
    %137 = arith.addf %135, %136 : vector<16x32xf32>
    %138 = arith.addf %137, %106 : vector<16x32xf32>
    %c0_58 = arith.constant 0 : index
    %c0_59 = arith.constant 0 : index
    %c0_60 = arith.constant 0 : index
    %139 = vector.load %arg15[%c0_58, %c0_59, %c0_60] : memref<1x1x32xf32, #tpu.memory_space<vmem>>, vector<1x1x32xf32>
    %140 = vector.shape_cast %139 : vector<1x1x32xf32> to vector<1x32xf32>
    %c0_61 = arith.constant 0 : index
    %c0_62 = arith.constant 0 : index
    %c0_63 = arith.constant 0 : index
    %141 = vector.load %arg16[%c0_61, %c0_62, %c0_63] : memref<1x1x32xf32, #tpu.memory_space<vmem>>, vector<1x1x32xf32>
    %142 = vector.shape_cast %141 : vector<1x1x32xf32> to vector<1x32xf32>
    %cst_64 = arith.constant dense<0.000000e+00> : vector<16xf32>
    %143 = vector.multi_reduction <add>, %138, %cst_64 [1] : vector<16x32xf32> to vector<16xf32>
    %144 = vector.shape_cast %143 : vector<16xf32> to vector<16x1xf32>
    %cst_65 = arith.constant 3.200000e+01 : f32
    %145 = vector.broadcast %cst_65 : f32 to vector<16x1xf32>
    %146 = arith.divf %144, %145 : vector<16x1xf32>
    %147 = vector.broadcast %146 : vector<16x1xf32> to vector<16x32xf32>
    %148 = arith.subf %138, %147 : vector<16x32xf32>
    %149 = arith.mulf %148, %148 : vector<16x32xf32>
    %cst_66 = arith.constant dense<0.000000e+00> : vector<16xf32>
    %150 = vector.multi_reduction <add>, %149, %cst_66 [1] : vector<16x32xf32> to vector<16xf32>
    %151 = vector.shape_cast %150 : vector<16xf32> to vector<16x1xf32>
    %cst_67 = arith.constant 3.200000e+01 : f32
    %152 = vector.broadcast %cst_67 : f32 to vector<16x1xf32>
    %153 = arith.divf %151, %152 : vector<16x1xf32>
    %cst_68 = arith.constant 9.99999996E-13 : f32
    %154 = vector.broadcast %cst_68 : f32 to vector<16x1xf32>
    %155 = arith.addf %153, %154 : vector<16x1xf32>
    %156 = math.rsqrt %155 : vector<16x1xf32>
    %157 = vector.broadcast %156 : vector<16x1xf32> to vector<16x32xf32>
    %158 = arith.mulf %148, %157 : vector<16x32xf32>
    %159 = vector.broadcast %140 : vector<1x32xf32> to vector<16x32xf32>
    %160 = arith.mulf %158, %159 : vector<16x32xf32>
    %161 = vector.broadcast %142 : vector<1x32xf32> to vector<16x32xf32>
    %162 = arith.addf %160, %161 : vector<16x32xf32>
    %c0_69 = arith.constant 0 : index
    %c0_70 = arith.constant 0 : index
    %163 = vector.load %arg18[%c0_69, %c0_70] : memref<16x32xf32, #tpu.memory_space<vmem>>, vector<16x32xf32>
    tpu.vector_store %arg18[%c0_69, %c0_70], %162 {strides = array<i32>} : memref<16x32xf32, #tpu.memory_space<vmem>>, vector<16x32xf32>,
    %c0_71 = arith.constant 0 : index
    %c0_72 = arith.constant 0 : index
    %164 = vector.load %arg17[%c0_71, %c0_72] : memref<16x32xf32, #tpu.memory_space<vmem>>, vector<16x32xf32>
    tpu.vector_store %arg17[%c0_71, %c0_72], %162 {strides = array<i32>} : memref<16x32xf32, #tpu.memory_space<vmem>>, vector<16x32xf32>,
    return
  }
  func.func @transform_0(%arg0: i32) -> (i32, i32) {
    %c0_i32 = arith.constant 0 : i32
    %c0_i32_0 = arith.constant 0 : i32
    %c0_i32_1 = arith.constant 0 : i32
    return %c0_i32, %c0_i32_0 : i32, i32
  }
  func.func @transform_1(%arg0: i32) -> (i32, i32) {
    %c0_i32 = arith.constant 0 : i32
    %c0_i32_0 = arith.constant 0 : i32
    %c0_i32_1 = arith.constant 0 : i32
    return %c0_i32, %c0_i32_0 : i32, i32
  }
  func.func @transform_2(%arg0: i32) -> (i32, i32) {
    %c0_i32 = arith.constant 0 : i32
    %c0_i32_0 = arith.constant 0 : i32
    %c0_i32_1 = arith.constant 0 : i32
    return %c0_i32, %c0_i32_0 : i32, i32
  }
  func.func @transform_3(%arg0: i32) -> (i32, i32) {
    %c0_i32 = arith.constant 0 : i32
    %c0_i32_0 = arith.constant 0 : i32
    %c0_i32_1 = arith.constant 0 : i32
    return %c0_i32, %c0_i32_0 : i32, i32
  }
  func.func @transform_4(%arg0: i32) -> (i32, i32, i32) {
    %c0_i32 = arith.constant 0 : i32
    %c0_i32_0 = arith.constant 0 : i32
    %c0_i32_1 = arith.constant 0 : i32
    return %arg0, %c0_i32, %c0_i32_0 : i32, i32, i32
  }
  func.func @transform_5(%arg0: i32) -> (i32, i32, i32) {
    %c0_i32 = arith.constant 0 : i32
    %c0_i32_0 = arith.constant 0 : i32
    %c0_i32_1 = arith.constant 0 : i32
    return %arg0, %c0_i32, %c0_i32_0 : i32, i32, i32
  }
  func.func @transform_6(%arg0: i32) -> (i32, i32, i32) {
    %c0_i32 = arith.constant 0 : i32
    %c0_i32_0 = arith.constant 0 : i32
    %c0_i32_1 = arith.constant 0 : i32
    return %arg0, %c0_i32, %c0_i32_0 : i32, i32, i32
  }
  func.func @transform_7(%arg0: i32) -> (i32, i32, i32) {
    %c0_i32 = arith.constant 0 : i32
    %c0_i32_0 = arith.constant 0 : i32
    %c0_i32_1 = arith.constant 0 : i32
    return %arg0, %c0_i32, %c0_i32_0 : i32, i32, i32
  }
  func.func @transform_8(%arg0: i32) -> (i32, i32, i32) {
    %c0_i32 = arith.constant 0 : i32
    %c0_i32_0 = arith.constant 0 : i32
    %c0_i32_1 = arith.constant 0 : i32
    return %arg0, %c0_i32, %c0_i32_0 : i32, i32, i32
  }
  func.func @transform_9(%arg0: i32) -> (i32, i32, i32) {
    %c0_i32 = arith.constant 0 : i32
    %c0_i32_0 = arith.constant 0 : i32
    %c0_i32_1 = arith.constant 0 : i32
    return %arg0, %c0_i32, %c0_i32_0 : i32, i32, i32
  }
  func.func @transform_10(%arg0: i32) -> (i32, i32, i32) {
    %c0_i32 = arith.constant 0 : i32
    %c0_i32_0 = arith.constant 0 : i32
    %c0_i32_1 = arith.constant 0 : i32
    return %arg0, %c0_i32, %c0_i32_0 : i32, i32, i32
  }
  func.func @transform_11(%arg0: i32) -> (i32, i32, i32) {
    %c0_i32 = arith.constant 0 : i32
    %c0_i32_0 = arith.constant 0 : i32
    %c0_i32_1 = arith.constant 0 : i32
    return %arg0, %c0_i32, %c0_i32_0 : i32, i32, i32
  }
  func.func @transform_12(%arg0: i32) -> (i32, i32, i32) {
    %c0_i32 = arith.constant 0 : i32
    %c0_i32_0 = arith.constant 0 : i32
    %c0_i32_1 = arith.constant 0 : i32
    return %arg0, %c0_i32, %c0_i32_0 : i32, i32, i32
  }
  func.func @transform_13(%arg0: i32) -> (i32, i32, i32) {
    %c0_i32 = arith.constant 0 : i32
    %c0_i32_0 = arith.constant 0 : i32
    %c0_i32_1 = arith.constant 0 : i32
    return %arg0, %c0_i32, %c0_i32_0 : i32, i32, i32
  }
  func.func @transform_14(%arg0: i32) -> (i32, i32, i32) {
    %c0_i32 = arith.constant 0 : i32
    %c0_i32_0 = arith.constant 0 : i32
    %c0_i32_1 = arith.constant 0 : i32
    return %arg0, %c0_i32, %c0_i32_0 : i32, i32, i32
  }
  func.func @transform_15(%arg0: i32) -> (i32, i32, i32) {
    %c0_i32 = arith.constant 0 : i32
    %c0_i32_0 = arith.constant 0 : i32
    %c0_i32_1 = arith.constant 0 : i32
    return %arg0, %c0_i32, %c0_i32_0 : i32, i32, i32
  }
  func.func @transform_16(%arg0: i32) -> (i32, i32) {
    %c0_i32 = arith.constant 0 : i32
    %c0_i32_0 = arith.constant 0 : i32
    %c0_i32_1 = arith.constant 0 : i32
    return %c0_i32, %c0_i32_0 : i32, i32
  }
}

</mosaic_0001>

<llo_original>
// kernel: tpu_custom_call.1
$region0: #{tpu_custom_call.1}
  #allocation0 [shape = 'u32[]', space=smem, size = 0x4, offset = 0x4, fixed_abs, tag = 'smem constant byte address 0x4 - core index']
  #allocation1 [shape = 'u32[72,128]{1,0:T(1,128)}', space=vmem, size = 0x9000, scoped, tag = 'internal scratch']
  #allocation2 [shape = 'f32[16,32]{1,0:T(8,128)}', space=vmem, size = 0x2000, scoped, tag = 'scratch operand']
  %s0 = inlined_call_operand.hbm [shape: f32[16,32], index: 0, kind: input, shape index: {}]
  %s1 = inlined_call_operand.hbm [shape: f32[2,8], index: 1, kind: input, shape index: {}]
  %s2 = inlined_call_operand.hbm [shape: f32[1,32], index: 2, kind: input, shape index: {}]
  %s3 = inlined_call_operand.hbm [shape: f32[1,32], index: 3, kind: input, shape index: {}]
  %s4 = inlined_call_operand.vmem [shape: f32[2,32,96], index: 4, kind: input, shape index: {}]
  %s5 = inlined_call_operand.vmem [shape: f32[2,1,96], index: 5, kind: input, shape index: {}]
  %s6 = inlined_call_operand.vmem [shape: f32[2,32,32], index: 6, kind: input, shape index: {}]
  %s7 = inlined_call_operand.vmem [shape: f32[2,1,32], index: 7, kind: input, shape index: {}]
  %s8 = inlined_call_operand.hbm [shape: f32[2,1,32], index: 8, kind: input, shape index: {}]
  %s9 = inlined_call_operand.vmem [shape: f32[2,1,32], index: 9, kind: input, shape index: {}]
  %s10 = inlined_call_operand.vmem [shape: f32[2,32,64], index: 10, kind: input, shape index: {}]
  %s11 = inlined_call_operand.vmem [shape: f32[2,1,64], index: 11, kind: input, shape index: {}]
  %s12 = inlined_call_operand.vmem [shape: f32[2,64,32], index: 12, kind: input, shape index: {}]
  %s13 = inlined_call_operand.vmem [shape: f32[2,1,32], index: 13, kind: input, shape index: {}]
  %s14 = inlined_call_operand.hbm [shape: f32[2,1,32], index: 14, kind: input, shape index: {}]
  %s15 = inlined_call_operand.vmem [shape: f32[2,1,32], index: 15, kind: input, shape index: {}]
  %s16 = inlined_call_operand.hbm [shape: f32[16,32], index: 16, kind: output, shape index: {}]
  %s17 = sld [smem:[#allocation0]]
  $region125: #{tpu_custom_call.1} parent=0
    _
  %s19 = ssub.s32 1, %s17
  %s20 = scalar_select 0, %s19, %s17
  $region1: #{tpu_custom_call.1} parent=0
    #allocation3 [shape = 'u8[8192]{0}', space=vmem, size = 0x2000, scoped, tag = 'input window, operand 0, single buffered']
    #allocation4 [shape = 's32[2]{0}', space=sflag, size = 0x8, scoped, tag = 'scoped memory for tpu_custom_call.1']
    #allocation5 [shape = 's32[2]{0}', space=sflag, size = 0x8, scoped, tag = 'scoped memory for tpu_custom_call.1']
    #allocation6 [shape = 'u8[1024]{0}', space=vmem, size = 0x400, scoped, tag = 'input window, operand 1, single buffered']
    #allocation7 [shape = 's32[1]{0}', space=sflag, size = 0x4, scoped, tag = 'scoped memory for tpu_custom_call.1']
    #allocation8 [shape = 'u8[512]{0}', space=vmem, size = 0x400, scoped, tag = 'input window, operand 2, single buffered']
    #allocation9 [shape = 'u8[512]{0}', space=vmem, size = 0x400, scoped, tag = 'input window, operand 3, single buffered']
    #allocation10 [shape = 's32[1]{0}', space=sflag, size = 0x4, scoped, tag = 'scoped memory for tpu_custom_call.1']
    #allocation11 [shape = 'u8[1024]{0}', space=vmem, size = 0x400, scoped, tag = 'input window, operand 8']
    #allocation12 [shape = 'u8[1024]{0}', space=vmem, size = 0x400, scoped, tag = 'input window, operand 14']
    #allocation13 [shape = 'u8[8192]{0}', space=vmem, size = 0x2000, scoped, tag = 'output window, operand 0, single buffered']
    %21 = vsyncpa [#allocation4], 0
    %22 = vsyncpa [#allocation7], 0
    %23 = vsyncpa [#allocation10], 0
    %24 = vsyncpa [#allocation5], 0
    loop: start=0, step=1, limit=4
    $region2: #{tpu_custom_call.1} parent=1 // loop_pre_header
      _
    $region3: #{tpu_custom_call.1} parent=1 // loop_header
      %s26 = sphi 0, %s30
      %p27 = scmp.ge.s32.totalorder %s26, 4
      %s34 = sphi 0, %s34
      %s36 = sphi 0, %s34
      %s37 = sphi 0, %s36
      %s51 = sphi 0, %s37
      %s55 = sphi 0, %s55
      %s57 = sphi 0, %s55
      %s58 = sphi 0, %s57
      %s72 = sphi 0, %s58
      %s76 = sphi 0, %s76
      %s78 = sphi 0, %s76
      %s79 = sphi 0, %s78
      %s93 = sphi 0, %s79
      %s97 = sphi 0, %s97
      %s99 = sphi 0, %s97
      %s100 = sphi 0, %s99
      %s114 = sphi 0, %s100
      %s120 = sphi 0, %s122
      %s123 = sphi 0, %s120
      %s124 = sphi 0, %s123
      %s140 = sphi 0, %s124
      %s146 = sphi 0, %s148
      %s149 = sphi 0, %s146
      %s150 = sphi 0, %s149
      %s166 = sphi 0, %s150
      %s172 = sphi 0, %s174
      %s175 = sphi 0, %s172
      %s176 = sphi 0, %s175
      %s192 = sphi 0, %s176
      %s198 = sphi 0, %s200
      %s201 = sphi 0, %s198
      %s202 = sphi 0, %s201
      %s218 = sphi 0, %s202
      %s224 = sphi 0, %s226
      %s227 = sphi 0, %s224
      %s228 = sphi 0, %s227
      %s244 = sphi 0, %s228
      %s250 = sphi 0, %s252
      %s253 = sphi 0, %s250
      %s254 = sphi 0, %s253
      %s270 = sphi 0, %s254
      %s276 = sphi 0, %s278
      %s279 = sphi 0, %s276
      %s280 = sphi 0, %s279
      %s296 = sphi 0, %s280
      %s302 = sphi 0, %s304
      %s305 = sphi 0, %s302
      %s306 = sphi 0, %s305
      %s322 = sphi 0, %s306
      %s328 = sphi 0, %s330
      %s331 = sphi 0, %s328
      %s332 = sphi 0, %s331
      %s348 = sphi 0, %s332
      %s354 = sphi 0, %s356
      %s357 = sphi 0, %s354
      %s358 = sphi 0, %s357
      %s374 = sphi 0, %s358
      %s380 = sphi 0, %s382
      %s383 = sphi 0, %s380
      %s384 = sphi 0, %s383
      %s400 = sphi 0, %s384
      %s406 = sphi 0, %s408
      %s409 = sphi 0, %s406
      %s410 = sphi 0, %s409
      %s426 = sphi 0, %s410
      %s430 = sphi 0, %s430
      %s432 = sphi 0, %s430
      %s433 = sphi 0, %s432
      %s447 = sphi 0, %s433
    $region4: #{tpu_custom_call.1} parent=1 // loop_header_branch
      %29 = sbr.rel (%p27) target = $region8
    $region5: #{tpu_custom_call.1} parent=1 // loop_body
      %s31 = ssub.s32 %s26, 1
      %s32 = ssub.s32 %s26, 2
      %s33 = sadd.s32 %s26, 1
      %s35 = sadd.s32 %s34, 1
      %p38 = scmp.eq.s32.totalorder %s26, 1
      %p39 = scmp.ne.s32.totalorder %s34, %s36
      %p40 = scmp.eq.s32.totalorder %s26, 0
      %p41 = por %p39, %p40
      %p42 = scmp.ne.s32.totalorder %s34, %s36
      %p43 = scmp.eq.s32.totalorder %s31, 1
      %p44 = por %p42, %p43
      %p45 = scmp.ne.s32.totalorder %s36, %s37
      %p46 = scmp.eq.s32.totalorder %s31, 0
      %p47 = por %p45, %p46
      %p48 = scmp.ne.s32.totalorder %s36, %s37
      %p49 = scmp.eq.s32.totalorder %s32, 1
      %p50 = por %p48, %p49
      %p52 = scmp.ne.s32.totalorder %s37, %s51
      %p53 = scmp.eq.s32.totalorder %s32, 0
      %p54 = por %p52, %p53
      %s56 = sadd.s32 %s55, 1
      %p59 = scmp.eq.s32.totalorder %s26, 1
      %p60 = scmp.ne.s32.totalorder %s55, %s57
      %p61 = scmp.eq.s32.totalorder %s26, 0
      %p62 = por %p60, %p61
      %p63 = scmp.ne.s32.totalorder %s55, %s57
      %p64 = scmp.eq.s32.totalorder %s31, 1
      %p65 = por %p63, %p64
      %p66 = scmp.ne.s32.totalorder %s57, %s58
      %p67 = scmp.eq.s32.totalorder %s31, 0
      %p68 = por %p66, %p67
      %p69 = scmp.ne.s32.totalorder %s57, %s58
      %p70 = scmp.eq.s32.totalorder %s32, 1
      %p71 = por %p69, %p70
      %p73 = scmp.ne.s32.totalorder %s58, %s72
      %p74 = scmp.eq.s32.totalorder %s32, 0
      %p75 = por %p73, %p74
      %s77 = sadd.s32 %s76, 1
      %p80 = scmp.eq.s32.totalorder %s26, 1
      %p81 = scmp.ne.s32.totalorder %s76, %s78
      %p82 = scmp.eq.s32.totalorder %s26, 0
      %p83 = por %p81, %p82
      %p84 = scmp.ne.s32.totalorder %s76, %s78
      %p85 = scmp.eq.s32.totalorder %s31, 1
      %p86 = por %p84, %p85
      %p87 = scmp.ne.s32.totalorder %s78, %s79
      %p88 = scmp.eq.s32.totalorder %s31, 0
      %p89 = por %p87, %p88
      %p90 = scmp.ne.s32.totalorder %s78, %s79
      %p91 = scmp.eq.s32.totalorder %s32, 1
      %p92 = por %p90, %p91
      %p94 = scmp.ne.s32.totalorder %s79, %s93
      %p95 = scmp.eq.s32.totalorder %s32, 0
      %p96 = por %p94, %p95
      %s98 = sadd.s32 %s97, 1
      %p101 = scmp.eq.s32.totalorder %s26, 1
      %p102 = scmp.ne.s32.totalorder %s97, %s99
      %p103 = scmp.eq.s32.totalorder %s26, 0
      %p104 = por %p102, %p103
      %p105 = scmp.ne.s32.totalorder %s97, %s99
      %p106 = scmp.eq.s32.totalorder %s31, 1
      %p107 = por %p105, %p106
      %p108 = scmp.ne.s32.totalorder %s99, %s100
      %p109 = scmp.eq.s32.totalorder %s31, 0
      %p110 = por %p108, %p109
      %p111 = scmp.ne.s32.totalorder %s99, %s100
      %p112 = scmp.eq.s32.totalorder %s32, 1
      %p113 = por %p111, %p112
      %p115 = scmp.ne.s32.totalorder %s100, %s114
      %p116 = scmp.eq.s32.totalorder %s32, 0
      %p117 = por %p115, %p116
      %s118 = ssub.s32 %s26, %s33
      %p119 = scmp.eq.s32.totalorder %s118, 0
      %s121 = sadd.s32 %s120, 1
      %s122 = scalar_select %p119, %s120, %s121
      %p125 = pneg %p119
      %p126 = scmp.eq.s32.totalorder %s26, 1
      %p127 = por %p125, %p126
      %p128 = scmp.ne.s32.totalorder %s120, %s123
      %p129 = scmp.eq.s32.totalorder %s26, 0
      %p130 = por %p128, %p129
      %p131 = scmp.ne.s32.totalorder %s120, %s123
      %p132 = scmp.eq.s32.totalorder %s31, 1
      %p133 = por %p131, %p132
      %p134 = scmp.ne.s32.totalorder %s123, %s124
      %p135 = scmp.eq.s32.totalorder %s31, 0
      %p136 = por %p134, %p135
      %p137 = scmp.ne.s32.totalorder %s123, %s124
      %p138 = scmp.eq.s32.totalorder %s32, 1
      %p139 = por %p137, %p138
      %p141 = scmp.ne.s32.totalorder %s124, %s140
      %p142 = scmp.eq.s32.totalorder %s32, 0
      %p143 = por %p141, %p142
      %s144 = ssub.s32 %s26, %s33
      %p145 = scmp.eq.s32.totalorder %s144, 0
      %s147 = sadd.s32 %s146, 1
      %s148 = scalar_select %p145, %s146, %s147
      %p151 = pneg %p145
      %p152 = scmp.eq.s32.totalorder %s26, 1
      %p153 = por %p151, %p152
      %p154 = scmp.ne.s32.totalorder %s146, %s149
      %p155 = scmp.eq.s32.totalorder %s26, 0
      %p156 = por %p154, %p155
      %p157 = scmp.ne.s32.totalorder %s146, %s149
      %p158 = scmp.eq.s32.totalorder %s31, 1
      %p159 = por %p157, %p158
      %p160 = scmp.ne.s32.totalorder %s149, %s150
      %p161 = scmp.eq.s32.totalorder %s31, 0
      %p162 = por %p160, %p161
      %p163 = scmp.ne.s32.totalorder %s149, %s150
      %p164 = scmp.eq.s32.totalorder %s32, 1
      %p165 = por %p163, %p164
      %p167 = scmp.ne.s32.totalorder %s150, %s166
      %p168 = scmp.eq.s32.totalorder %s32, 0
      %p169 = por %p167, %p168
      %s170 = ssub.s32 %s26, %s33
      %p171 = scmp.eq.s32.totalorder %s170, 0
      %s173 = sadd.s32 %s172, 1
      %s174 = scalar_select %p171, %s172, %s173
      %p177 = pneg %p171
      %p178 = scmp.eq.s32.totalorder %s26, 1
      %p179 = por %p177, %p178
      %p180 = scmp.ne.s32.totalorder %s172, %s175
      %p181 = scmp.eq.s32.totalorder %s26, 0
      %p182 = por %p180, %p181
      %p183 = scmp.ne.s32.totalorder %s172, %s175
      %p184 = scmp.eq.s32.totalorder %s31, 1
      %p185 = por %p183, %p184
      %p186 = scmp.ne.s32.totalorder %s175, %s176
      %p187 = scmp.eq.s32.totalorder %s31, 0
      %p188 = por %p186, %p187
      %p189 = scmp.ne.s32.totalorder %s175, %s176
      %p190 = scmp.eq.s32.totalorder %s32, 1
      %p191 = por %p189, %p190
      %p193 = scmp.ne.s32.totalorder %s176, %s192
      %p194 = scmp.eq.s32.totalorder %s32, 0
      %p195 = por %p193, %p194
      %s196 = ssub.s32 %s26, %s33
      %p197 = scmp.eq.s32.totalorder %s196, 0
      %s199 = sadd.s32 %s198, 1
      %s200 = scalar_select %p197, %s198, %s199
      %p203 = pneg %p197
      %p204 = scmp.eq.s32.totalorder %s26, 1
      %p205 = por %p203, %p204
      %p206 = scmp.ne.s32.totalorder %s198, %s201
      %p207 = scmp.eq.s32.totalorder %s26, 0
      %p208 = por %p206, %p207
      %p209 = scmp.ne.s32.totalorder %s198, %s201
      %p210 = scmp.eq.s32.totalorder %s31, 1
      %p211 = por %p209, %p210
      %p212 = scmp.ne.s32.totalorder %s201, %s202
      %p213 = scmp.eq.s32.totalorder %s31, 0
      %p214 = por %p212, %p213
      %p215 = scmp.ne.s32.totalorder %s201, %s202
      %p216 = scmp.eq.s32.totalorder %s32, 1
      %p217 = por %p215, %p216
      %p219 = scmp.ne.s32.totalorder %s202, %s218
      %p220 = scmp.eq.s32.totalorder %s32, 0
      %p221 = por %p219, %p220
      %s222 = ssub.s32 %s26, %s33
      %p223 = scmp.eq.s32.totalorder %s222, 0
      %s225 = sadd.s32 %s224, 1
      %s226 = scalar_select %p223, %s224, %s225
      %p229 = pneg %p223
      %p230 = scmp.eq.s32.totalorder %s26, 1
      %p231 = por %p229, %p230
      %p232 = scmp.ne.s32.totalorder %s224, %s227
      %p233 = scmp.eq.s32.totalorder %s26, 0
      %p234 = por %p232, %p233
      %p235 = scmp.ne.s32.totalorder %s224, %s227
      %p236 = scmp.eq.s32.totalorder %s31, 1
      %p237 = por %p235, %p236
      %p238 = scmp.ne.s32.totalorder %s227, %s228
      %p239 = scmp.eq.s32.totalorder %s31, 0
      %p240 = por %p238, %p239
      %p241 = scmp.ne.s32.totalorder %s227, %s228
      %p242 = scmp.eq.s32.totalorder %s32, 1
      %p243 = por %p241, %p242
      %p245 = scmp.ne.s32.totalorder %s228, %s244
      %p246 = scmp.eq.s32.totalorder %s32, 0
      %p247 = por %p245, %p246
      %s248 = ssub.s32 %s26, %s33
      %p249 = scmp.eq.s32.totalorder %s248, 0
      %s251 = sadd.s32 %s250, 1
      %s252 = scalar_select %p249, %s250, %s251
      %p255 = pneg %p249
      %p256 = scmp.eq.s32.totalorder %s26, 1
      %p257 = por %p255, %p256
      %p258 = scmp.ne.s32.totalorder %s250, %s253
      %p259 = scmp.eq.s32.totalorder %s26, 0
      %p260 = por %p258, %p259
      %p261 = scmp.ne.s32.totalorder %s250, %s253
      %p262 = scmp.eq.s32.totalorder %s31, 1
      %p263 = por %p261, %p262
      %p264 = scmp.ne.s32.totalorder %s253, %s254
      %p265 = scmp.eq.s32.totalorder %s31, 0
      %p266 = por %p264, %p265
      %p267 = scmp.ne.s32.totalorder %s253, %s254
      %p268 = scmp.eq.s32.totalorder %s32, 1
      %p269 = por %p267, %p268
      %p271 = scmp.ne.s32.totalorder %s254, %s270
      %p272 = scmp.eq.s32.totalorder %s32, 0
      %p273 = por %p271, %p272
      %s274 = ssub.s32 %s26, %s33
      %p275 = scmp.eq.s32.totalorder %s274, 0
      %s277 = sadd.s32 %s276, 1
      %s278 = scalar_select %p275, %s276, %s277
      %p281 = pneg %p275
      %p282 = scmp.eq.s32.totalorder %s26, 1
      %p283 = por %p281, %p282
      %p284 = scmp.ne.s32.totalorder %s276, %s279
      %p285 = scmp.eq.s32.totalorder %s26, 0
      %p286 = por %p284, %p285
      %p287 = scmp.ne.s32.totalorder %s276, %s279
      %p288 = scmp.eq.s32.totalorder %s31, 1
      %p289 = por %p287, %p288
      %p290 = scmp.ne.s32.totalorder %s279, %s280
      %p291 = scmp.eq.s32.totalorder %s31, 0
      %p292 = por %p290, %p291
      %p293 = scmp.ne.s32.totalorder %s279, %s280
      %p294 = scmp.eq.s32.totalorder %s32, 1
      %p295 = por %p293, %p294
      %p297 = scmp.ne.s32.totalorder %s280, %s296
      %p298 = scmp.eq.s32.totalorder %s32, 0
      %p299 = por %p297, %p298
      %s300 = ssub.s32 %s26, %s33
      %p301 = scmp.eq.s32.totalorder %s300, 0
      %s303 = sadd.s32 %s302, 1
      %s304 = scalar_select %p301, %s302, %s303
      %p307 = pneg %p301
      %p308 = scmp.eq.s32.totalorder %s26, 1
      %p309 = por %p307, %p308
      %p310 = scmp.ne.s32.totalorder %s302, %s305
      %p311 = scmp.eq.s32.totalorder %s26, 0
      %p312 = por %p310, %p311
      %p313 = scmp.ne.s32.totalorder %s302, %s305
      %p314 = scmp.eq.s32.totalorder %s31, 1
      %p315 = por %p313, %p314
      %p316 = scmp.ne.s32.totalorder %s305, %s306
      %p317 = scmp.eq.s32.totalorder %s31, 0
      %p318 = por %p316, %p317
      %p319 = scmp.ne.s32.totalorder %s305, %s306
      %p320 = scmp.eq.s32.totalorder %s32, 1
      %p321 = por %p319, %p320
      %p323 = scmp.ne.s32.totalorder %s306, %s322
      %p324 = scmp.eq.s32.totalorder %s32, 0
      %p325 = por %p323, %p324
      %s326 = ssub.s32 %s26, %s33
      %p327 = scmp.eq.s32.totalorder %s326, 0
      %s329 = sadd.s32 %s328, 1
      %s330 = scalar_select %p327, %s328, %s329
      %p333 = pneg %p327
      %p334 = scmp.eq.s32.totalorder %s26, 1
      %p335 = por %p333, %p334
      %p336 = scmp.ne.s32.totalorder %s328, %s331
      %p337 = scmp.eq.s32.totalorder %s26, 0
      %p338 = por %p336, %p337
      %p339 = scmp.ne.s32.totalorder %s328, %s331
      %p340 = scmp.eq.s32.totalorder %s31, 1
      %p341 = por %p339, %p340
      %p342 = scmp.ne.s32.totalorder %s331, %s332
      %p343 = scmp.eq.s32.totalorder %s31, 0
      %p344 = por %p342, %p343
      %p345 = scmp.ne.s32.totalorder %s331, %s332
      %p346 = scmp.eq.s32.totalorder %s32, 1
      %p347 = por %p345, %p346
      %p349 = scmp.ne.s32.totalorder %s332, %s348
      %p350 = scmp.eq.s32.totalorder %s32, 0
      %p351 = por %p349, %p350
      %s352 = ssub.s32 %s26, %s33
      %p353 = scmp.eq.s32.totalorder %s352, 0
      %s355 = sadd.s32 %s354, 1
      %s356 = scalar_select %p353, %s354, %s355
      %p359 = pneg %p353
      %p360 = scmp.eq.s32.totalorder %s26, 1
      %p361 = por %p359, %p360
      %p362 = scmp.ne.s32.totalorder %s354, %s357
      %p363 = scmp.eq.s32.totalorder %s26, 0
      %p364 = por %p362, %p363
      %p365 = scmp.ne.s32.totalorder %s354, %s357
      %p366 = scmp.eq.s32.totalorder %s31, 1
      %p367 = por %p365, %p366
      %p368 = scmp.ne.s32.totalorder %s357, %s358
      %p369 = scmp.eq.s32.totalorder %s31, 0
      %p370 = por %p368, %p369
      %p371 = scmp.ne.s32.totalorder %s357, %s358
      %p372 = scmp.eq.s32.totalorder %s32, 1
      %p373 = por %p371, %p372
      %p375 = scmp.ne.s32.totalorder %s358, %s374
      %p376 = scmp.eq.s32.totalorder %s32, 0
      %p377 = por %p375, %p376
      %s378 = ssub.s32 %s26, %s33
      %p379 = scmp.eq.s32.totalorder %s378, 0
      %s381 = sadd.s32 %s380, 1
      %s382 = scalar_select %p379, %s380, %s381
      %p385 = pneg %p379
      %p386 = scmp.eq.s32.totalorder %s26, 1
      %p387 = por %p385, %p386
      %p388 = scmp.ne.s32.totalorder %s380, %s383
      %p389 = scmp.eq.s32.totalorder %s26, 0
      %p390 = por %p388, %p389
      %p391 = scmp.ne.s32.totalorder %s380, %s383
      %p392 = scmp.eq.s32.totalorder %s31, 1
      %p393 = por %p391, %p392
      %p394 = scmp.ne.s32.totalorder %s383, %s384
      %p395 = scmp.eq.s32.totalorder %s31, 0
      %p396 = por %p394, %p395
      %p397 = scmp.ne.s32.totalorder %s383, %s384
      %p398 = scmp.eq.s32.totalorder %s32, 1
      %p399 = por %p397, %p398
      %p401 = scmp.ne.s32.totalorder %s384, %s400
      %p402 = scmp.eq.s32.totalorder %s32, 0
      %p403 = por %p401, %p402
      %s404 = ssub.s32 %s26, %s33
      %p405 = scmp.eq.s32.totalorder %s404, 0
      %s407 = sadd.s32 %s406, 1
      %s408 = scalar_select %p405, %s406, %s407
      %p411 = pneg %p405
      %p412 = scmp.eq.s32.totalorder %s26, 1
      %p413 = por %p411, %p412
      %p414 = scmp.ne.s32.totalorder %s406, %s409
      %p415 = scmp.eq.s32.totalorder %s26, 0
      %p416 = por %p414, %p415
      %p417 = scmp.ne.s32.totalorder %s406, %s409
      %p418 = scmp.eq.s32.totalorder %s31, 1
      %p419 = por %p417, %p418
      %p420 = scmp.ne.s32.totalorder %s409, %s410
      %p421 = scmp.eq.s32.totalorder %s31, 0
      %p422 = por %p420, %p421
      %p423 = scmp.ne.s32.totalorder %s409, %s410
      %p424 = scmp.eq.s32.totalorder %s32, 1
      %p425 = por %p423, %p424
      %p427 = scmp.ne.s32.totalorder %s410, %s426
      %p428 = scmp.eq.s32.totalorder %s32, 0
      %p429 = por %p427, %p428
      %s431 = sadd.s32 %s430, 1
      %p434 = scmp.eq.s32.totalorder %s26, 1
      %p435 = scmp.ne.s32.totalorder %s430, %s432
      %p436 = scmp.eq.s32.totalorder %s26, 0
      %p437 = por %p435, %p436
      %p438 = scmp.ne.s32.totalorder %s430, %s432
      %p439 = scmp.eq.s32.totalorder %s31, 1
      %p440 = por %p438, %p439
      %p441 = scmp.ne.s32.totalorder %s432, %s433
      %p442 = scmp.eq.s32.totalorder %s31, 0
      %p443 = por %p441, %p442
      %p444 = scmp.ne.s32.totalorder %s432, %s433
      %p445 = scmp.eq.s32.totalorder %s32, 1
      %p446 = por %p444, %p445
      %p448 = scmp.ne.s32.totalorder %s433, %s447
      %p449 = scmp.eq.s32.totalorder %s32, 0
      %p450 = por %p448, %p449
      %p451 = scmp.le.s32.totalorder 1, %s26
      %p452 = scmp.lt.s32.totalorder %s26, 3
      %p453 = pnand %p451, %p452
      %p454 = pneg %p453
      // Predicated region
      $region9: #{tpu_custom_call.1} parent=5 // pred_check
        _
      $region10: #{tpu_custom_call.1} parent=5 // pred_check_branch
        %456 = sbr.rel (%p453) target = $region12
      $region11: #{tpu_custom_call.1} parent=5 // pred_region
        %s457 = ssub.s32 %s26, 1
        // Predicated region
        $region13: #{tpu_custom_call.1} parent=11 // pred_check
          %p458 = pneg %p47
        $region14: #{tpu_custom_call.1} parent=11 // pred_check_branch
          %460 = sbr.rel (%p458) target = $region16
        $region15: #{tpu_custom_call.1} parent=11 // pred_region
          %462 = vsyncadd [#allocation4], 0
          %s463 = sshll.u32 %s0, 4
          %s464 = int_to_ptr.hbm [resolvable:$true] %s463
          %s465 = sshll.u32 [#allocation3], 4
          %s466 = int_to_ptr.vmem [resolvable:$true] %s465
          %471 = dma.hbm_to_vmem [thread:$0]  %s464, 256, %s466, [#allocation4], 128, 128, 8
        $region16: #{tpu_custom_call.1} parent=11 // pred_fallthru
          _
        // Predicated region
        $region17: #{tpu_custom_call.1} parent=11 // pred_check
          %p472 = pneg %p68
        $region18: #{tpu_custom_call.1} parent=11 // pred_check_branch
          %474 = sbr.rel (%p472) target = $region20
        $region19: #{tpu_custom_call.1} parent=11 // pred_region
          %476 = vsyncadd [#allocation7], 0
          %s478 = sshll.u32 %s1, 4
          %s479 = int_to_ptr.hbm [resolvable:$true] %s478
          %s480 = sshll.u32 [#allocation6], 4
          %s481 = int_to_ptr.vmem [resolvable:$true] %s480
          %483 = dma.hbm_to_vmem [thread:$0]  %s479, 32, %s481, [#allocation7]
        $region20: #{tpu_custom_call.1} parent=11 // pred_fallthru
          _
        // Predicated region
        $region21: #{tpu_custom_call.1} parent=11 // pred_check
          %p484 = pneg %p89
        $region22: #{tpu_custom_call.1} parent=11 // pred_check_branch
          %486 = sbr.rel (%p484) target = $region24
        $region23: #{tpu_custom_call.1} parent=11 // pred_region
          %488 = vsyncadd [#allocation7], 0
          %s490 = sshll.u32 %s2, 4
          %s491 = int_to_ptr.hbm [resolvable:$true] %s490
          %s492 = sshll.u32 [#allocation8], 4
          %s493 = int_to_ptr.vmem [resolvable:$true] %s492
          %495 = dma.hbm_to_vmem [thread:$0]  %s491, 16, %s493, [#allocation7]
        $region24: #{tpu_custom_call.1} parent=11 // pred_fallthru
          _
        // Predicated region
        $region25: #{tpu_custom_call.1} parent=11 // pred_check
          %p496 = pneg %p110
        $region26: #{tpu_custom_call.1} parent=11 // pred_check_branch
          %498 = sbr.rel (%p496) target = $region28
        $region27: #{tpu_custom_call.1} parent=11 // pred_region
          %500 = vsyncadd [#allocation10], 0
          %s502 = sshll.u32 %s3, 4
          %s503 = int_to_ptr.hbm [resolvable:$true] %s502
          %s504 = sshll.u32 [#allocation9], 4
          %s505 = int_to_ptr.vmem [resolvable:$true] %s504
          %507 = dma.hbm_to_vmem [thread:$0]  %s503, 16, %s505, [#allocation10]
        $region28: #{tpu_custom_call.1} parent=11 // pred_fallthru
          _
      $region12: #{tpu_custom_call.1} parent=5 // pred_fallthru
        _
      %p508 = scmp.lt.s32.totalorder %s26, 2
      // Predicated region
      $region29: #{tpu_custom_call.1} parent=5 // pred_check
        %p509 = pneg %p508
      $region30: #{tpu_custom_call.1} parent=5 // pred_check_branch
        %511 = sbr.rel (%p509) target = $region32
      $region31: #{tpu_custom_call.1} parent=5 // pred_region
        // Predicated region
        $region33: #{tpu_custom_call.1} parent=31 // pred_check
          %p512 = pneg %p130
        $region34: #{tpu_custom_call.1} parent=31 // pred_check_branch
          %514 = sbr.rel (%p512) target = $region36
        $region35: #{tpu_custom_call.1} parent=31 // pred_region
          %p515 = scmp.lt.s32.totalorder %s26, 1
          %s516 = scalar_select %p515, %s26, 1
          %s517 = smul.addr %s516, 4
          %s518 = smul.addr %s517, 8
          %s519 = scalar_lea.vmem %s4, %s518
        $region36: #{tpu_custom_call.1} parent=31 // pred_fallthru
          _
        // Predicated region
        $region37: #{tpu_custom_call.1} parent=31 // pred_check
          %p520 = pneg %p156
        $region38: #{tpu_custom_call.1} parent=31 // pred_check_branch
          %522 = sbr.rel (%p520) target = $region40
        $region39: #{tpu_custom_call.1} parent=31 // pred_region
          %p523 = scmp.lt.s32.totalorder %s26, 1
          %s524 = scalar_select %p523, %s26, 1
          %s525 = scalar_lea.vmem %s5, %s524
        $region40: #{tpu_custom_call.1} parent=31 // pred_fallthru
          _
        // Predicated region
        $region41: #{tpu_custom_call.1} parent=31 // pred_check
          %p526 = pneg %p182
        $region42: #{tpu_custom_call.1} parent=31 // pred_check_branch
          %528 = sbr.rel (%p526) target = $region44
        $region43: #{tpu_custom_call.1} parent=31 // pred_region
          %p529 = scmp.lt.s32.totalorder %s26, 1
          %s530 = scalar_select %p529, %s26, 1
          %s531 = smul.addr %s530, 4
          %s532 = smul.addr %s531, 8
          %s533 = scalar_lea.vmem %s6, %s532
        $region44: #{tpu_custom_call.1} parent=31 // pred_fallthru
          _
        // Predicated region
        $region45: #{tpu_custom_call.1} parent=31 // pred_check
          %p534 = pneg %p208
        $region46: #{tpu_custom_call.1} parent=31 // pred_check_branch
          %536 = sbr.rel (%p534) target = $region48
        $region47: #{tpu_custom_call.1} parent=31 // pred_region
          %p537 = scmp.lt.s32.totalorder %s26, 1
          %s538 = scalar_select %p537, %s26, 1
          %s539 = scalar_lea.vmem %s7, %s538
        $region48: #{tpu_custom_call.1} parent=31 // pred_fallthru
          _
        // Predicated region
        $region49: #{tpu_custom_call.1} parent=31 // pred_check
          %p540 = pneg %p234
        $region50: #{tpu_custom_call.1} parent=31 // pred_check_branch
          %542 = sbr.rel (%p540) target = $region52
        $region51: #{tpu_custom_call.1} parent=31 // pred_region
          %s543 = sand.u32 %s26, 1
          %s544 = scalar_lea.sflag [#allocation4], %s543
          %s545 = sand.u32 %s224, 1
          %s546 = scalar_lea.vmem [#allocation11], %s545
          %548 = vsyncadd %s544, 0
          %s549 = scalar_lea.hbm %s8, %s26
          %s551 = sshll.u32 %s549, 4
          %s552 = int_to_ptr.hbm [resolvable:$true] %s551
          %s553 = sshll.u32 %s546, 4
          %s554 = int_to_ptr.vmem [resolvable:$true] %s553
          %556 = dma.hbm_to_vmem [thread:$0]  %s552, 16, %s554, %s544
        $region52: #{tpu_custom_call.1} parent=31 // pred_fallthru
          _
        // Predicated region
        $region53: #{tpu_custom_call.1} parent=31 // pred_check
          %p557 = pneg %p260
        $region54: #{tpu_custom_call.1} parent=31 // pred_check_branch
          %559 = sbr.rel (%p557) target = $region56
        $region55: #{tpu_custom_call.1} parent=31 // pred_region
          %p560 = scmp.lt.s32.totalorder %s26, 1
          %s561 = scalar_select %p560, %s26, 1
          %s562 = scalar_lea.vmem %s9, %s561
        $region56: #{tpu_custom_call.1} parent=31 // pred_fallthru
          _
        // Predicated region
        $region57: #{tpu_custom_call.1} parent=31 // pred_check
          %p563 = pneg %p286
        $region58: #{tpu_custom_call.1} parent=31 // pred_check_branch
          %565 = sbr.rel (%p563) target = $region60
        $region59: #{tpu_custom_call.1} parent=31 // pred_region
          %p566 = scmp.lt.s32.totalorder %s26, 1
          %s567 = scalar_select %p566, %s26, 1
          %s568 = smul.addr %s567, 4
          %s569 = smul.addr %s568, 8
          %s570 = scalar_lea.vmem %s10, %s569
        $region60: #{tpu_custom_call.1} parent=31 // pred_fallthru
          _
        // Predicated region
        $region61: #{tpu_custom_call.1} parent=31 // pred_check
          %p571 = pneg %p312
        $region62: #{tpu_custom_call.1} parent=31 // pred_check_branch
          %573 = sbr.rel (%p571) target = $region64
        $region63: #{tpu_custom_call.1} parent=31 // pred_region
          %p574 = scmp.lt.s32.totalorder %s26, 1
          %s575 = scalar_select %p574, %s26, 1
          %s576 = scalar_lea.vmem %s11, %s575
        $region64: #{tpu_custom_call.1} parent=31 // pred_fallthru
          _
        // Predicated region
        $region65: #{tpu_custom_call.1} parent=31 // pred_check
          %p577 = pneg %p338
        $region66: #{tpu_custom_call.1} parent=31 // pred_check_branch
          %579 = sbr.rel (%p577) target = $region68
        $region67: #{tpu_custom_call.1} parent=31 // pred_region
          %p580 = scmp.lt.s32.totalorder %s26, 1
          %s581 = scalar_select %p580, %s26, 1
          %s582 = smul.addr %s581, 8
          %s583 = smul.addr %s582, 8
          %s584 = scalar_lea.vmem %s12, %s583
        $region68: #{tpu_custom_call.1} parent=31 // pred_fallthru
          _
        // Predicated region
        $region69: #{tpu_custom_call.1} parent=31 // pred_check
          %p585 = pneg %p364
        $region70: #{tpu_custom_call.1} parent=31 // pred_check_branch
          %587 = sbr.rel (%p585) target = $region72
        $region71: #{tpu_custom_call.1} parent=31 // pred_region
          %p588 = scmp.lt.s32.totalorder %s26, 1
          %s589 = scalar_select %p588, %s26, 1
          %s590 = scalar_lea.vmem %s13, %s589
        $region72: #{tpu_custom_call.1} parent=31 // pred_fallthru
          _
        // Predicated region
        $region73: #{tpu_custom_call.1} parent=31 // pred_check
          %p591 = pneg %p390
        $region74: #{tpu_custom_call.1} parent=31 // pred_check_branch
          %593 = sbr.rel (%p591) target = $region76
        $region75: #{tpu_custom_call.1} parent=31 // pred_region
          %s594 = sand.u32 %s26, 1
          %s595 = scalar_lea.sflag [#allocation4], %s594
          %s596 = sand.u32 %s380, 1
          %s597 = scalar_lea.vmem [#allocation12], %s596
          %599 = vsyncadd %s595, 0
          %s600 = scalar_lea.hbm %s14, %s26
          %s602 = sshll.u32 %s600, 4
          %s603 = int_to_ptr.hbm [resolvable:$true] %s602
          %s604 = sshll.u32 %s597, 4
          %s605 = int_to_ptr.vmem [resolvable:$true] %s604
          %607 = dma.hbm_to_vmem [thread:$0]  %s603, 16, %s605, %s595
        $region76: #{tpu_custom_call.1} parent=31 // pred_fallthru
          _
        // Predicated region
        $region77: #{tpu_custom_call.1} parent=31 // pred_check
          %p608 = pneg %p416
        $region78: #{tpu_custom_call.1} parent=31 // pred_check_branch
          %610 = sbr.rel (%p608) target = $region80
        $region79: #{tpu_custom_call.1} parent=31 // pred_region
          %p611 = scmp.lt.s32.totalorder %s26, 1
          %s612 = scalar_select %p611, %s26, 1
          %s613 = scalar_lea.vmem %s15, %s612
        $region80: #{tpu_custom_call.1} parent=31 // pred_fallthru
          _
      $region32: #{tpu_custom_call.1} parent=5 // pred_fallthru
        _
      %p614 = scmp.le.s32.totalorder 1, %s26
      %p615 = scmp.lt.s32.totalorder %s26, 3
      %p616 = pnand %p614, %p615
      %p617 = pneg %p616
      // Predicated region
      $region81: #{tpu_custom_call.1} parent=5 // pred_check
        _
      $region82: #{tpu_custom_call.1} parent=5 // pred_check_branch
        %619 = sbr.rel (%p616) target = $region84
      $region83: #{tpu_custom_call.1} parent=5 // pred_region
        %s620 = ssub.s32 %s26, 1
        // Predicated region
        $region85: #{tpu_custom_call.1} parent=83 // pred_check
          %p621 = pneg %p47
        $region86: #{tpu_custom_call.1} parent=83 // pred_check_branch
          %623 = sbr.rel (%p621) target = $region88
        $region87: #{tpu_custom_call.1} parent=83 // pred_region
          %625 = dma.done [#allocation4], 256
        $region88: #{tpu_custom_call.1} parent=83 // pred_fallthru
          _
        // Predicated region
        $region89: #{tpu_custom_call.1} parent=83 // pred_check
          %p626 = pneg %p68
        $region90: #{tpu_custom_call.1} parent=83 // pred_check_branch
          %628 = sbr.rel (%p626) target = $region92
        $region91: #{tpu_custom_call.1} parent=83 // pred_region
          %630 = dma.done [#allocation7], 32
        $region92: #{tpu_custom_call.1} parent=83 // pred_fallthru
          _
        // Predicated region
        $region93: #{tpu_custom_call.1} parent=83 // pred_check
          %p631 = pneg %p89
        $region94: #{tpu_custom_call.1} parent=83 // pred_check_branch
          %633 = sbr.rel (%p631) target = $region96
        $region95: #{tpu_custom_call.1} parent=83 // pred_region
          %635 = dma.done [#allocation7], 16
        $region96: #{tpu_custom_call.1} parent=83 // pred_fallthru
          _
        // Predicated region
        $region97: #{tpu_custom_call.1} parent=83 // pred_check
          %p636 = pneg %p110
        $region98: #{tpu_custom_call.1} parent=83 // pred_check_branch
          %638 = sbr.rel (%p636) target = $region100
        $region99: #{tpu_custom_call.1} parent=83 // pred_region
          %640 = dma.done [#allocation10], 16
        $region100: #{tpu_custom_call.1} parent=83 // pred_fallthru
          _
        %s641 = sand.u32 %s31, 1
        %s642 = scalar_lea.sflag [#allocation4], %s641
        %s643 = sand.u32 %s227, 1
        %s644 = scalar_lea.vmem [#allocation11], %s643
        // Predicated region
        $region101: #{tpu_custom_call.1} parent=83 // pred_check
          %p645 = pneg %p240
        $region102: #{tpu_custom_call.1} parent=83 // pred_check_branch
          %647 = sbr.rel (%p645) target = $region104
        $region103: #{tpu_custom_call.1} parent=83 // pred_region
          %649 = dma.done %s642, 16
        $region104: #{tpu_custom_call.1} parent=83 // pred_fallthru
          _
        %s650 = sand.u32 %s31, 1
        %s651 = scalar_lea.sflag [#allocation4], %s650
        %s652 = sand.u32 %s383, 1
        %s653 = scalar_lea.vmem [#allocation12], %s652
        // Predicated region
        $region105: #{tpu_custom_call.1} parent=83 // pred_check
          %p654 = pneg %p396
        $region106: #{tpu_custom_call.1} parent=83 // pred_check_branch
          %656 = sbr.rel (%p654) target = $region108
        $region107: #{tpu_custom_call.1} parent=83 // pred_region
          %658 = dma.done %s651, 16
        $region108: #{tpu_custom_call.1} parent=83 // pred_fallthru
          _
        %p659 = pneg %p47
        %p660 = pneg %p44
        %p661 = pneg %p68
        %p662 = pneg %p65
        %p663 = pneg %p89
        %p664 = pneg %p86
        %p665 = pneg %p110
        %p666 = pneg %p107
        %p667 = scmp.lt.s32.totalorder %s31, 1
        %s668 = scalar_select %p667, %s31, 1
        %s669 = smul.addr %s668, 4
        %s670 = smul.addr %s669, 8
        %s671 = scalar_lea.vmem %s4, %s670
        %p672 = pneg %p136
        %p673 = pneg %p133
        %p674 = scmp.lt.s32.totalorder %s31, 1
        %s675 = scalar_select %p674, %s31, 1
        %s676 = scalar_lea.vmem %s5, %s675
        %p677 = pneg %p162
        %p678 = pneg %p159
        %p679 = scmp.lt.s32.totalorder %s31, 1
        %s680 = scalar_select %p679, %s31, 1
        %s681 = smul.addr %s680, 4
        %s682 = smul.addr %s681, 8
        %s683 = scalar_lea.vmem %s6, %s682
        %p684 = pneg %p188
        %p685 = pneg %p185
        %p686 = scmp.lt.s32.totalorder %s31, 1
        %s687 = scalar_select %p686, %s31, 1
        %s688 = scalar_lea.vmem %s7, %s687
        %p689 = pneg %p214
        %p690 = pneg %p211
        %s691 = sand.u32 %s31, 1
        %s692 = scalar_lea.sflag [#allocation4], %s691
        %s693 = sand.u32 %s227, 1
        %s694 = scalar_lea.vmem [#allocation11], %s693
        %p695 = pneg %p240
        %p696 = pneg %p237
        %p697 = scmp.lt.s32.totalorder %s31, 1
        %s698 = scalar_select %p697, %s31, 1
        %s699 = scalar_lea.vmem %s9, %s698
        %p700 = pneg %p266
        %p701 = pneg %p263
        %p702 = scmp.lt.s32.totalorder %s31, 1
        %s703 = scalar_select %p702, %s31, 1
        %s704 = smul.addr %s703, 4
        %s705 = smul.addr %s704, 8
        %s706 = scalar_lea.vmem %s10, %s705
        %p707 = pneg %p292
        %p708 = pneg %p289
        %p709 = scmp.lt.s32.totalorder %s31, 1
        %s710 = scalar_select %p709, %s31, 1
        %s711 = scalar_lea.vmem %s11, %s710
        %p712 = pneg %p318
        %p713 = pneg %p315
        %p714 = scmp.lt.s32.totalorder %s31, 1
        %s715 = scalar_select %p714, %s31, 1
        %s716 = smul.addr %s715, 8
        %s717 = smul.addr %s716, 8
        %s718 = scalar_lea.vmem %s12, %s717
        %p719 = pneg %p344
        %p720 = pneg %p341
        %p721 = scmp.lt.s32.totalorder %s31, 1
        %s722 = scalar_select %p721, %s31, 1
        %s723 = scalar_lea.vmem %s13, %s722
        %p724 = pneg %p370
        %p725 = pneg %p367
        %s726 = sand.u32 %s31, 1
        %s727 = scalar_lea.sflag [#allocation4], %s726
        %s728 = sand.u32 %s383, 1
        %s729 = scalar_lea.vmem [#allocation12], %s728
        %p730 = pneg %p396
        %p731 = pneg %p393
        %p732 = scmp.lt.s32.totalorder %s31, 1
        %s733 = scalar_select %p732, %s31, 1
        %s734 = scalar_lea.vmem %s15, %s733
        %p735 = pneg %p422
        %p736 = pneg %p419
        %p737 = pneg %p443
        %p738 = pneg %p440
        %p739 = scmp.lt.s32.totalorder %s31, 1
        %s740 = scalar_select %p739, %s31, 1
        %s741 = smul.addr %s740, 4
        %s742 = smul.addr %s741, 8
        %s743 = scalar_lea.vmem %s4, %s742
        %p744 = scmp.lt.s32.totalorder %s31, 1
        %s745 = scalar_select %p744, %s31, 1
        %s746 = scalar_lea.vmem %s5, %s745
        %p747 = scmp.lt.s32.totalorder %s31, 1
        %s748 = scalar_select %p747, %s31, 1
        %s749 = smul.addr %s748, 4
        %s750 = smul.addr %s749, 8
        %s751 = scalar_lea.vmem %s6, %s750
        %p752 = scmp.lt.s32.totalorder %s31, 1
        %s753 = scalar_select %p752, %s31, 1
        %s754 = scalar_lea.vmem %s7, %s753
        %p755 = scmp.lt.s32.totalorder %s31, 1
        %s756 = scalar_select %p755, %s31, 1
        %s757 = scalar_lea.vmem %s9, %s756
        %p758 = scmp.lt.s32.totalorder %s31, 1
        %s759 = scalar_select %p758, %s31, 1
        %s760 = smul.addr %s759, 4
        %s761 = smul.addr %s760, 8
        %s762 = scalar_lea.vmem %s10, %s761
        %p763 = scmp.lt.s32.totalorder %s31, 1
        %s764 = scalar_select %p763, %s31, 1
        %s765 = scalar_lea.vmem %s11, %s764
        %p766 = scmp.lt.s32.totalorder %s31, 1
        %s767 = scalar_select %p766, %s31, 1
        %s768 = smul.addr %s767, 8
        %s769 = smul.addr %s768, 8
        %s770 = scalar_lea.vmem %s12, %s769
        %p771 = scmp.lt.s32.totalorder %s31, 1
        %s772 = scalar_select %p771, %s31, 1
        %s773 = scalar_lea.vmem %s13, %s772
        %p774 = scmp.lt.s32.totalorder %s31, 1
        %s775 = scalar_select %p774, %s31, 1
        %s776 = scalar_lea.vmem %s15, %s775
        %p778 = scmp.eq.s32.totalorder %s31, 0
        // Predicated region
        $region109: #{tpu_custom_call.1} parent=83 // pred_check
          %p779 = pneg %p778
        $region110: #{tpu_custom_call.1} parent=83 // pred_check_branch
          %781 = sbr.rel (%p779) target = $region112
        $region111: #{tpu_custom_call.1} parent=83 // pred_region
          %v782 = vld [vmem:[#allocation3] sm:$0xff]
          %v783 = vld [vmem:[#allocation3 + $0x8] sm:$0xff]
          %v784 = vld [vmem:[#allocation8] sm:$0x1]
          %v785 = vld [vmem:[#allocation9] sm:$0x1]
          %vm786 = vcmask 261120
          %v787 = vsel %vm786, %v782, 0.0
          %788 = vadd.xlane.f32.xlu0 %v787
          %v789 = vpop.xlane.xlu0 %788
          %v790 = vsel %vm786, %v783, 0.0
          %791 = vadd.xlane.f32.xlu0 %v790
          %v792 = vpop.xlane.xlu0 %791
          %v793 = vrcp.pop 32.0
          %v794 = vmul.f32 32.0, %v793
          %v795 = vsub.f32 1.0, %v794
          %v796 = vmul.f32 %v793, %v795
          %v797 = vadd.f32 %v793, %v796
          %vm798 = vweird.f32 %v793
          %v799 = vsel %vm798, %v793, %v797
          %v800 = vmul.f32 %v789, %v799
          %v801 = vmul.f32 %v792, %v799
          %v802 = vsub.f32 %v782, %v800
          %v803 = vsub.f32 %v783, %v801
          %v804 = vmul.f32 %v802, %v802
          %v805 = vmul.f32 %v803, %v803
          %v806 = vsel %vm786, %v804, 0.0
          %807 = vadd.xlane.f32.xlu0 %v806
          %v808 = vpop.xlane.xlu0 %807
          %v809 = vsel %vm786, %v805, 0.0
          %810 = vadd.xlane.f32.xlu0 %v809
          %v811 = vpop.xlane.xlu0 %810
          %v812 = vmul.f32 %v808, %v799
          %v813 = vmul.f32 %v811, %v799
          %v814 = vadd.f32 %v812, 1e-12
          %v815 = vadd.f32 %v813, 1e-12
          %v816 = vrsqrt.pop %v814
          %v817 = vmul.f32 %v816, %v814
          %v818 = vmul.f32 %v817, %v816
          %v819 = vmul.f32 0.5, %v818
          %v820 = vsub.f32 1.5, %v819
          %v821 = vmul.f32 %v816, %v820
          %vm822 = vweird.f32 %v814
          %vm823 = vweird.f32 %v816
          %vm824 = vmor %vm822, %vm823
          %v825 = vsel %vm824, %v816, %v821
          %v826 = vrsqrt.pop %v815
          %v827 = vmul.f32 %v826, %v815
          %v828 = vmul.f32 %v827, %v826
          %v829 = vmul.f32 0.5, %v828
          %v830 = vsub.f32 1.5, %v829
          %v831 = vmul.f32 %v826, %v830
          %vm832 = vweird.f32 %v815
          %vm833 = vweird.f32 %v826
          %vm834 = vmor %vm832, %vm833
          %v835 = vsel %vm834, %v826, %v831
          %v836 = vmul.f32 %v802, %v825
          %v837 = vmul.f32 %v803, %v835
          %v839 = vperm.slane %v784, 0
          %v841 = vmul.f32 %v836, %v839
          %v842 = vmul.f32 %v837, %v839
          %v844 = vperm.slane %v785, 0
          %v846 = vadd.f32 %v841, %v844
          %v847 = vadd.f32 %v842, %v844
          %848 = vst.msk [vmem:[#allocation2] sm:$0xff] %vm786, %v846
          %849 = vst.msk [vmem:[#allocation2 + $0x8] sm:$0xff] %vm786, %v847
        $region112: #{tpu_custom_call.1} parent=83 // pred_fallthru
          _
        %v850 = vld [vmem:[#allocation2] sm:$0xff]
        %v851 = vld [vmem:[#allocation2 + $0x8] sm:$0xff]
        %v852 = vld [vmem:[%s743] sm:$0xff]
        %v853 = vld [vmem:[%s743 + $0x8] sm:$0xff]
        %v854 = vld [vmem:[%s743 + $0x10] sm:$0xff]
        %v855 = vld [vmem:[%s743 + $0x18] sm:$0xff]
        %v856 = vld [vmem:[%s746] sm:$0x1]
        %v857 = vpack.c.bf16 %v851, %v850
        %v858 = vpack.c.bf16 %v853, %v852
        %v859 = vpack.c.bf16 %v855, %v854
        %v861 = vperm.slane %v856, 0
        %vm863 = vcmask 261120
        %v865 = vsel %vm863, %v857, 0
        %867 = vmatpush.bf16.msra.mxu0 0
        %868 = vmatpush.bf16.msra.mxu0 0
        %869 = vmatpush.bf16.msra.mxu0 0
        %870 = vmatpush.bf16.msra.mxu0 0
        %871 = vmatpush.bf16.msra.mxu0 0
        %872 = vmatpush.bf16.msra.mxu0 0
        %873 = vmatpush.bf16.msra.mxu0 %v859
        %874 = vmatpush.bf16.msra.mxu0 %v858
        %875 = vmatmul.bf16.gmra.mxu0 %v865
        %v876 = vpop.f32.mrf.mxu0
        %v877 = vadd.f32 %v861, %v876
        %v878 = vpop.f32.mrf.mxu0
        %v879 = vadd.f32 %v861, %v878
        %880 = vdwg.mxu0
        %v881 = vld [vmem:[#allocation6] sm:$0x3]
        %v882 = vsub.f32 1.0, %v881
        %v883 = vmul.f32 %v882, -10000.0
        %v885 = vrot.slane %v883, 1
        %v886 = vpack.c.bf16 %v877, %v877
        %v887 = vpack.c.bf16 %v879, %v879
        %v889 = vunpack.c.l.b16 %v886
        %v890 = vpack.c.b16 %v889, %v889
        %891 = vrot.lane.b32.xlu0 %v890, 96
        %v892 = vpop.permute.xlu0 %891
        %vm893 = vcmask 130048
        %v895 = vsel %vm893, %v886, 0
        %v898 = vsel %vm893, %v892, 0
        %900 = vmatpush.bf16.xpose.msra.mxu0 0
        %901 = vmatpush.bf16.xpose.msra.mxu0 0
        %902 = vmatpush.bf16.xpose.msra.mxu0 0
        %903 = vmatpush.bf16.xpose.msra.mxu0 0
        %904 = vmatpush.bf16.xpose.msra.mxu0 0
        %905 = vmatpush.bf16.xpose.msra.mxu0 0
        %906 = vmatpush.bf16.xpose.msra.mxu0 0
        %907 = vmatpush.bf16.xpose.msra.mxu0 %v898
        %908 = vmatmul.bf16.gmra.mxu0 %v895
        %v909 = vpop.f32.mrf.mxu0
        %v910 = vadd.f32 0.0, %v909
        %v911 = vpop.f32.mrf.mxu0
        %912 = vdwg.mxu0
        %v914 = vunpack.c.l.b16 %v887
        %v915 = vpack.c.b16 %v914, %v914
        %916 = vrot.lane.b32.xlu0 %v915, 96
        %v917 = vpop.permute.xlu0 %916
        %v919 = vsel %vm893, %v887, 0
        %v922 = vsel %vm893, %v917, 0
        %924 = vmatpush.bf16.xpose.msra.mxu0 0
        %925 = vmatpush.bf16.xpose.msra.mxu0 0
        %926 = vmatpush.bf16.xpose.msra.mxu0 0
        %927 = vmatpush.bf16.xpose.msra.mxu0 0
        %928 = vmatpush.bf16.xpose.msra.mxu0 0
        %929 = vmatpush.bf16.xpose.msra.mxu0 0
        %930 = vmatpush.bf16.xpose.msra.mxu0 0
        %931 = vmatpush.bf16.xpose.msra.mxu0 %v922
        %932 = vmatmul.bf16.gmra.mxu0 %v919
        %v933 = vpop.f32.mrf.mxu0
        %v934 = vadd.f32 0.0, %v933
        %v935 = vpop.f32.mrf.mxu0
        %936 = vdwg.mxu0
        %v937 = vmul.f32 %v910, 0.25
        %v938 = vmul.f32 %v934, 0.25
        %v939 = vperm.slane %v883, 0
        %v940 = vperm.slane %v885, 0
        %v943 = vadd.f32 %v937, %v939
        %v944 = vadd.f32 %v938, %v940
        %vm945 = vcmask 64512
        %v946 = vsel %vm945, %v943, -inf
        %947 = vmax.xlane.f32.xlu0 %v946
        %v948 = vpop.xlane.xlu0 %947
        %v949 = vsel %vm945, %v944, -inf
        %950 = vmax.xlane.f32.xlu0 %v949
        %v951 = vpop.xlane.xlu0 %950
        %v952 = vsub.f32 %v943, %v948
        %v953 = vsub.f32 %v944, %v951
        %v954 = vmul.f32 %v952, 1.442695
        %v955 = vpow.pop %v954
        %v956 = vmul.f32 %v953, 1.442695
        %v957 = vpow.pop %v956
        %v958 = vsel %vm945, %v955, 0.0
        %959 = vadd.xlane.f32.xlu0 %v958
        %v960 = vpop.xlane.xlu0 %959
        %v961 = vsel %vm945, %v957, 0.0
        %962 = vadd.xlane.f32.xlu0 %v961
        %v963 = vpop.xlane.xlu0 %962
        %v964 = vrcp.pop %v960
        %v965 = vrcp.pop %v963
        %v966 = vmul.f32 %v955, %v964
        %v967 = vmul.f32 %v957, %v965
        %v968 = vpack.c.bf16 %v966, %v966
        %v969 = vpack.c.bf16 %v967, %v967
        %970 = vrot.lane.b32.xlu0 %v890, 64
        %v971 = vpop.permute.xlu0 %970
        %v973 = vsel %vm945, %v968, 0
        %vm975 = vcmask 1043456
        %v977 = vsel %vm975, %v971, 0
        %979 = vmatpush.bf16.msra.mxu0 0
        %980 = vmatpush.bf16.msra.mxu0 0
        %981 = vmatpush.bf16.msra.mxu0 0
        %982 = vmatpush.bf16.msra.mxu0 0
        %983 = vmatpush.bf16.msra.mxu0 0
        %984 = vmatpush.bf16.msra.mxu0 0
        %985 = vmatpush.bf16.msra.mxu0 0
        %986 = vmatpush.bf16.msra.mxu0 %v977
        %987 = vmatmul.bf16.gmra.mxu0 %v973
        %v988 = vpop.f32.mrf.mxu0
        %v989 = vadd.f32 0.0, %v988
        %v990 = vpop.f32.mrf.mxu0
        %991 = vdwg.mxu0
        %992 = vrot.lane.b32.xlu0 %v915, 64
        %v993 = vpop.permute.xlu0 %992
        %v995 = vsel %vm945, %v969, 0
        %v998 = vsel %vm975, %v993, 0
        %1000 = vmatpush.bf16.msra.mxu0 0
        %1001 = vmatpush.bf16.msra.mxu0 0
        %1002 = vmatpush.bf16.msra.mxu0 0
        %1003 = vmatpush.bf16.msra.mxu0 0
        %1004 = vmatpush.bf16.msra.mxu0 0
        %1005 = vmatpush.bf16.msra.mxu0 0
        %1006 = vmatpush.bf16.msra.mxu0 0
        %1007 = vmatpush.bf16.msra.mxu0 %v998
        %1008 = vmatmul.bf16.gmra.mxu0 %v995
        %v1009 = vpop.f32.mrf.mxu0
        %v1010 = vadd.f32 0.0, %v1009
        %v1011 = vpop.f32.mrf.mxu0
        %1012 = vdwg.mxu0
        %1013 = vrot.lane.b32.xlu0 %v890, 112
        %v1014 = vpop.permute.xlu0 %1013
        %1015 = vrot.lane.b32.xlu0 %v890, 80
        %v1016 = vpop.permute.xlu0 %1015
        %v1018 = vsel %vm893, %v1014, 0
        %v1021 = vsel %vm893, %v1016, 0
        %1023 = vmatpush.bf16.xpose.msra.mxu0 0
        %1024 = vmatpush.bf16.xpose.msra.mxu0 0
        %1025 = vmatpush.bf16.xpose.msra.mxu0 0
        %1026 = vmatpush.bf16.xpose.msra.mxu0 0
        %1027 = vmatpush.bf16.xpose.msra.mxu0 0
        %1028 = vmatpush.bf16.xpose.msra.mxu0 0
        %1029 = vmatpush.bf16.xpose.msra.mxu0 0
        %1030 = vmatpush.bf16.xpose.msra.mxu0 %v1021
        %1031 = vmatmul.bf16.gmra.mxu0 %v1018
        %v1032 = vpop.f32.mrf.mxu0
        %v1033 = vadd.f32 0.0, %v1032
        %v1034 = vpop.f32.mrf.mxu0
        %1035 = vdwg.mxu0
        %1036 = vrot.lane.b32.xlu0 %v915, 112
        %v1037 = vpop.permute.xlu0 %1036
        %1038 = vrot.lane.b32.xlu0 %v915, 80
        %v1039 = vpop.permute.xlu0 %1038
        %v1041 = vsel %vm893, %v1037, 0
        %v1044 = vsel %vm893, %v1039, 0
        %1046 = vmatpush.bf16.xpose.msra.mxu0 0
        %1047 = vmatpush.bf16.xpose.msra.mxu0 0
        %1048 = vmatpush.bf16.xpose.msra.mxu0 0
        %1049 = vmatpush.bf16.xpose.msra.mxu0 0
        %1050 = vmatpush.bf16.xpose.msra.mxu0 0
        %1051 = vmatpush.bf16.xpose.msra.mxu0 0
        %1052 = vmatpush.bf16.xpose.msra.mxu0 0
        %1053 = vmatpush.bf16.xpose.msra.mxu0 %v1044
        %1054 = vmatmul.bf16.gmra.mxu0 %v1041
        %v1055 = vpop.f32.mrf.mxu0
        %v1056 = vadd.f32 0.0, %v1055
        %v1057 = vpop.f32.mrf.mxu0
        %1058 = vdwg.mxu0
        %v1059 = vmul.f32 %v1033, 0.25
        %v1060 = vmul.f32 %v1056, 0.25
        %v1061 = vadd.f32 %v1059, %v939
        %v1062 = vadd.f32 %v1060, %v940
        %v1063 = vsel %vm945, %v1061, -inf
        %1064 = vmax.xlane.f32.xlu0 %v1063
        %v1065 = vpop.xlane.xlu0 %1064
        %v1066 = vsel %vm945, %v1062, -inf
        %1067 = vmax.xlane.f32.xlu0 %v1066
        %v1068 = vpop.xlane.xlu0 %1067
        %v1069 = vsub.f32 %v1061, %v1065
        %v1070 = vsub.f32 %v1062, %v1068
        %v1071 = vmul.f32 %v1069, 1.442695
        %v1072 = vpow.pop %v1071
        %v1073 = vmul.f32 %v1070, 1.442695
        %v1074 = vpow.pop %v1073
        %v1075 = vsel %vm945, %v1072, 0.0
        %1076 = vadd.xlane.f32.xlu0 %v1075
        %v1077 = vpop.xlane.xlu0 %1076
        %v1078 = vsel %vm945, %v1074, 0.0
        %1079 = vadd.xlane.f32.xlu0 %v1078
        %v1080 = vpop.xlane.xlu0 %1079
        %v1081 = vrcp.pop %v1077
        %v1082 = vrcp.pop %v1080
        %v1083 = vmul.f32 %v1072, %v1081
        %v1084 = vmul.f32 %v1074, %v1082
        %v1085 = vpack.c.bf16 %v1083, %v1083
        %v1086 = vpack.c.bf16 %v1084, %v1084
        %1087 = vrot.lane.b32.xlu0 %v890, 48
        %v1088 = vpop.permute.xlu0 %1087
        %v1090 = vsel %vm945, %v1085, 0
        %v1093 = vsel %vm975, %v1088, 0
        %1095 = vmatpush.bf16.msra.mxu0 0
        %1096 = vmatpush.bf16.msra.mxu0 0
        %1097 = vmatpush.bf16.msra.mxu0 0
        %1098 = vmatpush.bf16.msra.mxu0 0
        %1099 = vmatpush.bf16.msra.mxu0 0
        %1100 = vmatpush.bf16.msra.mxu0 0
        %1101 = vmatpush.bf16.msra.mxu0 0
        %1102 = vmatpush.bf16.msra.mxu0 %v1093
        %1103 = vmatmul.bf16.gmra.mxu0 %v1090
        %v1104 = vpop.f32.mrf.mxu0
        %v1105 = vadd.f32 0.0, %v1104
        %v1106 = vpop.f32.mrf.mxu0
        %1107 = vdwg.mxu0
        %1108 = vrot.lane.b32.xlu0 %v915, 48
        %v1109 = vpop.permute.xlu0 %1108
        %v1111 = vsel %vm945, %v1086, 0
        %v1114 = vsel %vm975, %v1109, 0
        %1116 = vmatpush.bf16.msra.mxu0 0
        %1117 = vmatpush.bf16.msra.mxu0 0
        %1118 = vmatpush.bf16.msra.mxu0 0
        %1119 = vmatpush.bf16.msra.mxu0 0
        %1120 = vmatpush.bf16.msra.mxu0 0
        %1121 = vmatpush.bf16.msra.mxu0 0
        %1122 = vmatpush.bf16.msra.mxu0 0
        %1123 = vmatpush.bf16.msra.mxu0 %v1114
        %1124 = vmatmul.bf16.gmra.mxu0 %v1111
        %v1125 = vpop.f32.mrf.mxu0
        %v1126 = vadd.f32 0.0, %v1125
        %v1127 = vpop.f32.mrf.mxu0
        %1128 = vdwg.mxu0
        %1131 = vrot.lane.b32.xlu0 %v1105, 16
        %v1132 = vpop.permute.xlu0 %1131
        %1133 = vrot.lane.b32.xlu0 %v1126, 16
        %v1134 = vpop.permute.xlu0 %1133
        %v1137 = vsel %vm893, %v989, %v1132
        %v1138 = vsel %vm893, %v1010, %v1134
        %v1139 = vld [vmem:[%s751] sm:$0xff]
        %v1140 = vld [vmem:[%s751 + $0x8] sm:$0xff]
        %v1141 = vld [vmem:[%s751 + $0x10] sm:$0xff]
        %v1142 = vld [vmem:[%s751 + $0x18] sm:$0xff]
        %v1143 = vld [vmem:[%s754] sm:$0x1]
        %v1144 = vpack.c.bf16 %v1138, %v1137
        %v1145 = vpack.c.bf16 %v1140, %v1139
        %v1146 = vpack.c.bf16 %v1142, %v1141
        %v1148 = vperm.slane %v1143, 0
        %v1151 = vsel %vm863, %v1144, 0
        %1153 = vmatpush.bf16.msra.mxu0 0
        %1154 = vmatpush.bf16.msra.mxu0 0
        %1155 = vmatpush.bf16.msra.mxu0 0
        %1156 = vmatpush.bf16.msra.mxu0 0
        %1157 = vmatpush.bf16.msra.mxu0 0
        %1158 = vmatpush.bf16.msra.mxu0 0
        %1159 = vmatpush.bf16.msra.mxu0 %v1146
        %1160 = vmatpush.bf16.msra.mxu0 %v1145
        %1161 = vmatmul.bf16.gmra.mxu0 %v1151
        %v1162 = vpop.f32.mrf.mxu0
        %v1163 = vadd.f32 %v1148, %v1162
        %v1164 = vpop.f32.mrf.mxu0
        %v1165 = vadd.f32 %v1148, %v1164
        %1166 = vdwg.mxu0
        %v1167 = vadd.f32 %v1163, %v850
        %v1168 = vadd.f32 %v1165, %v851
        %v1169 = vld [vmem:[%s644] sm:$0x1]
        %v1170 = vld [vmem:[%s757] sm:$0x1]
        %v1171 = vsel %vm863, %v1167, 0.0
        %1172 = vadd.xlane.f32.xlu0 %v1171
        %v1173 = vpop.xlane.xlu0 %1172
        %v1174 = vsel %vm863, %v1168, 0.0
        %1175 = vadd.xlane.f32.xlu0 %v1174
        %v1176 = vpop.xlane.xlu0 %1175
        %v1177 = vrcp.pop 32.0
        %v1178 = vmul.f32 32.0, %v1177
        %v1179 = vsub.f32 1.0, %v1178
        %v1180 = vmul.f32 %v1177, %v1179
        %v1181 = vadd.f32 %v1177, %v1180
        %vm1182 = vweird.f32 %v1177
        %v1183 = vsel %vm1182, %v1177, %v1181
        %v1184 = vmul.f32 %v1173, %v1183
        %v1185 = vmul.f32 %v1176, %v1183
        %v1186 = vsub.f32 %v1167, %v1184
        %v1187 = vsub.f32 %v1168, %v1185
        %v1188 = vmul.f32 %v1186, %v1186
        %v1189 = vmul.f32 %v1187, %v1187
        %v1190 = vsel %vm863, %v1188, 0.0
        %1191 = vadd.xlane.f32.xlu0 %v1190
        %v1192 = vpop.xlane.xlu0 %1191
        %v1193 = vsel %vm863, %v1189, 0.0
        %1194 = vadd.xlane.f32.xlu0 %v1193
        %v1195 = vpop.xlane.xlu0 %1194
        %v1196 = vmul.f32 %v1192, %v1183
        %v1197 = vmul.f32 %v1195, %v1183
        %v1198 = vadd.f32 %v1196, 1e-12
        %v1199 = vadd.f32 %v1197, 1e-12
        %v1200 = vrsqrt.pop %v1198
        %v1201 = vmul.f32 %v1200, %v1198
        %v1202 = vmul.f32 %v1201, %v1200
        %v1203 = vmul.f32 0.5, %v1202
        %v1204 = vsub.f32 1.5, %v1203
        %v1205 = vmul.f32 %v1200, %v1204
        %vm1206 = vweird.f32 %v1198
        %vm1207 = vweird.f32 %v1200
        %vm1208 = vmor %vm1206, %vm1207
        %v1209 = vsel %vm1208, %v1200, %v1205
        %v1210 = vrsqrt.pop %v1199
        %v1211 = vmul.f32 %v1210, %v1199
        %v1212 = vmul.f32 %v1211, %v1210
        %v1213 = vmul.f32 0.5, %v1212
        %v1214 = vsub.f32 1.5, %v1213
        %v1215 = vmul.f32 %v1210, %v1214
        %vm1216 = vweird.f32 %v1199
        %vm1217 = vweird.f32 %v1210
        %vm1218 = vmor %vm1216, %vm1217
        %v1219 = vsel %vm1218, %v1210, %v1215
        %v1220 = vmul.f32 %v1186, %v1209
        %v1221 = vmul.f32 %v1187, %v1219
        %v1223 = vperm.slane %v1169, 0
        %v1225 = vmul.f32 %v1220, %v1223
        %v1226 = vmul.f32 %v1221, %v1223
        %v1228 = vperm.slane %v1170, 0
        %v1230 = vadd.f32 %v1225, %v1228
        %v1231 = vadd.f32 %v1226, %v1228
        %v1232 = vld [vmem:[%s762] sm:$0xff]
        %v1233 = vld [vmem:[%s762 + $0x8] sm:$0xff]
        %v1234 = vld [vmem:[%s762 + $0x10] sm:$0xff]
        %v1235 = vld [vmem:[%s762 + $0x18] sm:$0xff]
        %v1236 = vld [vmem:[%s765] sm:$0x1]
        %v1237 = vpack.c.bf16 %v1231, %v1230
        %v1238 = vpack.c.bf16 %v1233, %v1232
        %v1239 = vpack.c.bf16 %v1235, %v1234
        %v1241 = vperm.slane %v1236, 0
        %v1244 = vsel %vm863, %v1237, 0
        %1246 = vmatpush.bf16.msra.mxu0 0
        %1247 = vmatpush.bf16.msra.mxu0 0
        %1248 = vmatpush.bf16.msra.mxu0 0
        %1249 = vmatpush.bf16.msra.mxu0 0
        %1250 = vmatpush.bf16.msra.mxu0 0
        %1251 = vmatpush.bf16.msra.mxu0 0
        %1252 = vmatpush.bf16.msra.mxu0 %v1239
        %1253 = vmatpush.bf16.msra.mxu0 %v1238
        %1254 = vmatmul.bf16.gmra.mxu0 %v1244
        %v1255 = vpop.f32.mrf.mxu0
        %v1256 = vadd.f32 %v1241, %v1255
        %v1257 = vpop.f32.mrf.mxu0
        %v1258 = vadd.f32 %v1241, %v1257
        %1259 = vdwg.mxu0
        %v1260 = vmul.f32 %v1256, 0.5
        %v1261 = vmul.f32 %v1258, 0.5
        %v1262 = vmul.f32 %v1256, 0.044715
        %v1263 = vmul.f32 %v1258, 0.044715
        %v1264 = vmul.f32 %v1262, %v1256
        %v1265 = vmul.f32 %v1263, %v1258
        %v1266 = vmul.f32 %v1264, %v1256
        %v1267 = vmul.f32 %v1265, %v1258
        %v1268 = vadd.f32 %v1256, %v1266
        %v1269 = vadd.f32 %v1258, %v1267
        %v1270 = vmul.f32 %v1268, 0.7978846
        %v1271 = vmul.f32 %v1269, 0.7978846
        %v1272 = vtanh.pop %v1270
        %v1273 = vtanh.pop %v1271
        %v1274 = vadd.f32 %v1272, 1.0
        %v1275 = vadd.f32 %v1273, 1.0
        %v1276 = vmul.f32 %v1260, %v1274
        %v1277 = vmul.f32 %v1261, %v1275
        %v1278 = vld [vmem:[%s770] sm:$0xff]
        %v1279 = vld [vmem:[%s770 + $0x8] sm:$0xff]
        %v1280 = vld [vmem:[%s770 + $0x10] sm:$0xff]
        %v1281 = vld [vmem:[%s770 + $0x18] sm:$0xff]
        %v1282 = vld [vmem:[%s770 + $0x20] sm:$0xff]
        %v1283 = vld [vmem:[%s770 + $0x28] sm:$0xff]
        %v1284 = vld [vmem:[%s770 + $0x30] sm:$0xff]
        %v1285 = vld [vmem:[%s770 + $0x38] sm:$0xff]
        %v1286 = vld [vmem:[%s773] sm:$0x1]
        %v1287 = vpack.c.bf16 %v1277, %v1276
        %v1288 = vpack.c.bf16 %v1279, %v1278
        %v1289 = vpack.c.bf16 %v1281, %v1280
        %v1290 = vpack.c.bf16 %v1283, %v1282
        %v1291 = vpack.c.bf16 %v1285, %v1284
        %v1293 = vperm.slane %v1286, 0
        %vm1295 = vcmask 523264
        %v1297 = vsel %vm1295, %v1287, 0
        %1299 = vmatpush.bf16.msra.mxu0 0
        %1300 = vmatpush.bf16.msra.mxu0 0
        %1301 = vmatpush.bf16.msra.mxu0 0
        %1302 = vmatpush.bf16.msra.mxu0 0
        %1303 = vmatpush.bf16.msra.mxu0 %v1291
        %1304 = vmatpush.bf16.msra.mxu0 %v1290
        %1305 = vmatpush.bf16.msra.mxu0 %v1289
        %1306 = vmatpush.bf16.msra.mxu0 %v1288
        %1307 = vmatmul.bf16.gmra.mxu0 %v1297
        %v1308 = vpop.f32.mrf.mxu0
        %v1309 = vadd.f32 %v1293, %v1308
        %v1310 = vpop.f32.mrf.mxu0
        %v1311 = vadd.f32 %v1293, %v1310
        %1312 = vdwg.mxu0
        %v1313 = vadd.f32 %v1309, %v1230
        %v1314 = vadd.f32 %v1311, %v1231
        %v1315 = vld [vmem:[%s653] sm:$0x1]
        %v1316 = vld [vmem:[%s776] sm:$0x1]
        %v1317 = vsel %vm863, %v1313, 0.0
        %1318 = vadd.xlane.f32.xlu0 %v1317
        %v1319 = vpop.xlane.xlu0 %1318
        %v1320 = vsel %vm863, %v1314, 0.0
        %1321 = vadd.xlane.f32.xlu0 %v1320
        %v1322 = vpop.xlane.xlu0 %1321
        %v1323 = vmul.f32 %v1319, %v1183
        %v1324 = vmul.f32 %v1322, %v1183
        %v1325 = vsub.f32 %v1313, %v1323
        %v1326 = vsub.f32 %v1314, %v1324
        %v1327 = vmul.f32 %v1325, %v1325
        %v1328 = vmul.f32 %v1326, %v1326
        %v1329 = vsel %vm863, %v1327, 0.0
        %1330 = vadd.xlane.f32.xlu0 %v1329
        %v1331 = vpop.xlane.xlu0 %1330
        %v1332 = vsel %vm863, %v1328, 0.0
        %1333 = vadd.xlane.f32.xlu0 %v1332
        %v1334 = vpop.xlane.xlu0 %1333
        %v1335 = vmul.f32 %v1331, %v1183
        %v1336 = vmul.f32 %v1334, %v1183
        %v1337 = vadd.f32 %v1335, 1e-12
        %v1338 = vadd.f32 %v1336, 1e-12
        %v1339 = vrsqrt.pop %v1337
        %v1340 = vmul.f32 %v1339, %v1337
        %v1341 = vmul.f32 %v1340, %v1339
        %v1342 = vmul.f32 0.5, %v1341
        %v1343 = vsub.f32 1.5, %v1342
        %v1344 = vmul.f32 %v1339, %v1343
        %vm1345 = vweird.f32 %v1337
        %vm1346 = vweird.f32 %v1339
        %vm1347 = vmor %vm1345, %vm1346
        %v1348 = vsel %vm1347, %v1339, %v1344
        %v1349 = vrsqrt.pop %v1338
        %v1350 = vmul.f32 %v1349, %v1338
        %v1351 = vmul.f32 %v1350, %v1349
        %v1352 = vmul.f32 0.5, %v1351
        %v1353 = vsub.f32 1.5, %v1352
        %v1354 = vmul.f32 %v1349, %v1353
        %vm1355 = vweird.f32 %v1338
        %vm1356 = vweird.f32 %v1349
        %vm1357 = vmor %vm1355, %vm1356
        %v1358 = vsel %vm1357, %v1349, %v1354
        %v1359 = vmul.f32 %v1325, %v1348
        %v1360 = vmul.f32 %v1326, %v1358
        %v1362 = vperm.slane %v1315, 0
        %v1364 = vmul.f32 %v1359, %v1362
        %v1365 = vmul.f32 %v1360, %v1362
        %v1367 = vperm.slane %v1316, 0
        %v1369 = vadd.f32 %v1364, %v1367
        %v1370 = vadd.f32 %v1365, %v1367
        %1371 = vst.msk [vmem:[#allocation2] sm:$0xff] %vm863, %v1369
        %1372 = vst.msk [vmem:[#allocation2 + $0x8] sm:$0xff] %vm863, %v1370
        %1373 = vst.msk [vmem:[#allocation13] sm:$0xff] %vm863, %v1369
        %1374 = vst.msk [vmem:[#allocation13 + $0x8] sm:$0xff] %vm863, %v1370
        // Predicated region
        $region113: #{tpu_custom_call.1} parent=83 // pred_check
          %p1375 = pneg %p440
        $region114: #{tpu_custom_call.1} parent=83 // pred_check_branch
          %1377 = sbr.rel (%p1375) target = $region116
        $region115: #{tpu_custom_call.1} parent=83 // pred_region
          %1379 = vsyncadd [#allocation5], 0
          %s1380 = sshll.u32 [#allocation13], 4
          %s1381 = int_to_ptr.vmem [resolvable:$true] %s1380
          %s1382 = sshll.u32 %s16, 4
          %s1383 = int_to_ptr.hbm [resolvable:$true] %s1382
          %1388 = dma.vmem_to_hbm [thread:$0]  %s1381, 256, %s1383, [#allocation5], 128, 128, 8
        $region116: #{tpu_custom_call.1} parent=83 // pred_fallthru
          _
        // Predicated region
        $region117: #{tpu_custom_call.1} parent=83 // pred_check
          %p1389 = pneg %p440
        $region118: #{tpu_custom_call.1} parent=83 // pred_check_branch
          %1391 = sbr.rel (%p1389) target = $region120
        $region119: #{tpu_custom_call.1} parent=83 // pred_region
          %1393 = dma.done [#allocation5], 256
        $region120: #{tpu_custom_call.1} parent=83 // pred_fallthru
          _
      $region84: #{tpu_custom_call.1} parent=5 // pred_fallthru
        _
      %p1394 = scmp.le.s32.totalorder 2, %s26
      // Predicated region
      $region121: #{tpu_custom_call.1} parent=5 // pred_check
        %p1395 = pneg %p1394
      $region122: #{tpu_custom_call.1} parent=5 // pred_check_branch
        %1397 = sbr.rel (%p1395) target = $region124
      $region123: #{tpu_custom_call.1} parent=5 // pred_region
        %s1398 = ssub.s32 %s26, 2
      $region124: #{tpu_custom_call.1} parent=5 // pred_fallthru
        _
    $region6: #{tpu_custom_call.1} parent=1 // loop_footer
      %s30 = sadd.s32 1, %s26
    $region7: #{tpu_custom_call.1} parent=1 // loop_footer_branch
      %25 = sbr.rel target = $region3
    $region8: #{tpu_custom_call.1} parent=1 // loop_exit
      _
    %1399 = vsyncpa [#allocation4], 1
    %s1400 = scalar_lea.sflag [#allocation4], 1
    %1401 = vsyncpa %s1400, 1
    %1402 = vsyncpa [#allocation7], 1
    %1403 = vsyncpa [#allocation10], 1
    %1404 = vsyncpa [#allocation5], 1
    %s1405 = scalar_lea.sflag [#allocation5], 1
    %1406 = vsyncpa %s1405, 1

</llo_original>
